<compile_context>
chip_gen: v6e
topology: v6e:2x2x1
jax: 0.10.0
libtpu: 0.0.40
codegen_flags: <defaults>
</compile_context>

<pallas_src>
import functools

import jax
import jax.numpy as jnp
from jax import lax
from jax.experimental import pallas as pl
from jax.experimental.pallas import tpu as pltpu

_NEG_BIG = -3.0e38  # sentinel error for padded slots -> sorts to the very end


# ----------------------------- kernels --------------------------------------

def _hinge_kernel(logits_ref, labels_ref, err_ref, *, n_valid):
    # errors = 1 - logits * (2*labels - 1); padded lanes forced to a huge negative
    # value so the (descending) sort places them last.
    x = logits_ref[...]                                   # [1, Ppad]
    y = labels_ref[...]                                   # [1, Ppad]
    e = 1.0 - x * (2.0 * y - 1.0)
    col = lax.broadcasted_iota(jnp.int32, e.shape, 1)
    err_ref[...] = jnp.where(col < n_valid, e, _NEG_BIG)


def _lovasz_kernel(err_ref, gt_ref, o_ref, *, n_valid):
    # err_ref: errors sorted descending (pads at the end), gt_ref: labels permuted the
    # same way ({0,1}, pads are 0).  Computes lovasz_grad and the final dot product.
    e = err_ref[...]                                      # [1, Ppad] f32
    g = gt_ref[...]                                       # [1, Ppad] f32
    p = e.shape[1]

    col = lax.broadcasted_iota(jnp.int32, (1, p), 1)
    colf = col.astype(jnp.float32)
    valid = (col < n_valid).astype(jnp.float32)
    g = g * valid                                         # pads already 0; keep for safety

    gts = jnp.sum(g, axis=1, keepdims=True)               # [1, 1]  total positives

    # Inclusive cumsum of gt_sorted via a triangular matmul on the MXU.
    # Both operands are {0,1} and accumulation is f32, so this is exact.
    jj = lax.broadcasted_iota(jnp.int32, (p, p), 0)
    ii = lax.broadcasted_iota(jnp.int32, (p, p), 1)
    tri = (jj <= ii).astype(jnp.float32)                  # T[j, i] = 1 if j <= i
    cs = jnp.dot(g, tri, preferred_element_type=jnp.float32)   # c_i = sum_{j<=i} g_j

    # jaccard_i   = 1 - (G - c_i)     / (G + (i+1) - c_i)
    # jaccard_{i-1} uses c_{i-1} = c_i - g_i  (pads are at the end, so within the valid
    # prefix cumsum(1-g)_i == (i+1) - c_i).  No shift/roll needed -> all VPU, exact.
    jac = 1.0 - (gts - cs) / (gts + (colf + 1.0) - cs)
    c_prev = cs - g
    jac_prev = 1.0 - (gts - c_prev) / (gts + colf - c_prev)
    jac_prev = jnp.where(col == 0, 0.0, jac_prev)         # grad[0] = jaccard[0]
    grad = jac - jac_prev

    # elu(e) + 1 == e + 1 for e > 0, exp(e) otherwise.  exp(-3e38) underflows to 0.
    f = jnp.where(e > 0.0, e + 1.0, jnp.exp(e))

    o_ref[...] = jnp.sum(f * grad * valid, axis=1, keepdims=True)   # [1, 1]


# --------------------------- pallas wrappers ---------------------------------

def _hinge_pallas(logits_2d, labels_2d, n_valid):
    ppad = logits_2d.shape[1]
    kernel = functools.partial(_hinge_kernel, n_valid=n_valid)
    return pl.pallas_call(
        kernel,
        out_shape=jax.ShapeDtypeStruct((1, ppad), jnp.float32),
        grid_spec=pltpu.PrefetchScalarGridSpec(
            num_scalar_prefetch=0,
            grid=(1,),
            in_specs=[pl.BlockSpec((1, ppad), lambda i: (0, 0)),
                      pl.BlockSpec((1, ppad), lambda i: (0, 0))],
            out_specs=pl.BlockSpec((1, ppad), lambda i: (0, 0))),
        compiler_params=pltpu.CompilerParams(dimension_semantics=("arbitrary",)),
    )(logits_2d, labels_2d)


def _lovasz_pallas(errors_sorted_2d, gt_sorted_2d, n_valid):
    ppad = errors_sorted_2d.shape[1]
    kernel = functools.partial(_lovasz_kernel, n_valid=n_valid)
    return pl.pallas_call(
        kernel,
        out_shape=jax.ShapeDtypeStruct((1, 1), jnp.float32),
        grid_spec=pltpu.PrefetchScalarGridSpec(
            num_scalar_prefetch=0,
            grid=(1,),
            in_specs=[pl.BlockSpec((1, ppad), lambda i: (0, 0)),
                      pl.BlockSpec((1, ppad), lambda i: (0, 0))],
            out_specs=pl.BlockSpec((1, 1), lambda i: (0, 0))),
        compiler_params=pltpu.CompilerParams(
            dimension_semantics=("arbitrary",),
            vmem_limit_bytes=48 * 1024 * 1024),
    )(errors_sorted_2d, gt_sorted_2d)


# ----------------------------- module forward --------------------------------

def lovasz_loss(logits, labels, ignore_index=None):
    if ignore_index is not None:
        # TODO(synk): ignore_index needs dynamic-shape boolean filtering; only the
        # module default (ignore_index=None) is implemented.
        raise NotImplementedError("ignore_index is not supported")

    lo = logits.reshape(-1).astype(jnp.float32)
    la = labels.reshape(-1).astype(jnp.float32)
    n = lo.shape[0]
    ppad = max(128, ((n + 127) // 128) * 128)
    if ppad > 1024:
        # TODO(synk): for large P, replace the [Ppad, Ppad] triangular-matmul cumsum with
        # a hierarchical (blockwise) cumsum to keep the VMEM footprint bounded.
        raise NotImplementedError("P > 1024 requires a hierarchical cumsum")

    lo2d = jnp.pad(lo, (0, ppad - n)).reshape(1, ppad)
    la2d = jnp.pad(la, (0, ppad - n)).reshape(1, ppad)

    # Stage 1 (Pallas): hinge errors, pads forced to -3e38.
    errors = _hinge_pallas(lo2d, la2d, n)

    # Stage 2 (XLA): torch.sort(descending=True) with permutation has no clean Pallas
    # equivalent on TPU -> stable key/value sort (ascending on -errors == descending on
    # errors); padded slots sort to the end.
    neg_sorted, gt_sorted = lax.sort_key_val(-errors.reshape(-1), la2d.reshape(-1))
    errors_sorted = (-neg_sorted).reshape(1, ppad)
    gt_sorted = gt_sorted.reshape(1, ppad)

    # Stage 3 (Pallas, fused): lovasz_grad + elu + dot -> scalar.
    out = _lovasz_pallas(errors_sorted, gt_sorted, n)
    return out[0, 0]


# ----------------------------- pure-JAX reference ----------------------------

def reference_lovasz(logits, labels):
    lo = logits.reshape(-1).astype(jnp.float32)
    la = labels.reshape(-1).astype(jnp.float32)
    errors = 1.0 - lo * (2.0 * la - 1.0)
    order = jnp.argsort(-errors)                      # stable, descending on errors
    errors_sorted = errors[order]
    gt_sorted = la[order]
    gts = gt_sorted.sum()
    intersection = gts - jnp.cumsum(gt_sorted)
    union = gts + jnp.cumsum(1.0 - gt_sorted)
    jaccard = 1.0 - intersection / union
    grad = jnp.concatenate([jaccard[:1], jaccard[1:] - jaccard[:-1]])
    f = jnp.where(errors_sorted > 0.0, errors_sorted + 1.0, jnp.exp(errors_sorted))
    return jnp.dot(f, grad)


# ----------------------------- main ------------------------------------------

if __name__ == "__main__":
    key = jax.random.PRNGKey(0)
    k1, k2 = jax.random.split(key)

    # Binary segmentation: batch=2, spatial 16x16  ->  P = 512 pixels.
    shape = (2, 16, 16)
    logits = jax.random.normal(k1, shape, jnp.float32)
    labels = (jax.random.uniform(k2, shape) > 0.5).astype(jnp.float32)

    loss_fn = jax.jit(lovasz_loss)
    loss = jax.block_until_ready(loss_fn(logits, labels))

    ref = reference_lovasz(logits, labels)
    err = float(jnp.abs(loss - ref))
    assert err < 1e-4, f"abs error {err} (pallas={float(loss)}, ref={float(ref)})"
    print("KERNEL_OK")
</pallas_src>

<mosaic_0001>
module attributes {stable_mosaic.version = 11 : i64} {
  func.func @_hinge_kernel(%arg0: i32, %arg1: memref<1x512xf32, #tpu.memory_space<vmem>>, %arg2: memref<1x512xf32, #tpu.memory_space<vmem>>, %arg3: memref<1x512xf32, #tpu.memory_space<vmem>>) attributes {dimension_semantics = [#tpu.dimension_semantics<arbitrary>], iteration_bounds = array<i64: 1>, scalar_prefetch = 0 : i64, scratch_operands = 0 : i64, tpu.core_type = #tpu.core_type<tc>, window_params = [{pipeline_mode = #tpu.pipeline_mode<synchronous>, transform_indices = @transform_0, window_bounds = array<i64: 1, 512>}, {pipeline_mode = #tpu.pipeline_mode<synchronous>, transform_indices = @transform_1, window_bounds = array<i64: 1, 512>}, {pipeline_mode = #tpu.pipeline_mode<synchronous>, transform_indices = @transform_2, window_bounds = array<i64: 1, 512>}]} {
    %c0 = arith.constant 0 : index
    %c0_0 = arith.constant 0 : index
    %0 = vector.load %arg1[%c0, %c0_0] : memref<1x512xf32, #tpu.memory_space<vmem>>, vector<1x512xf32>
    %c0_1 = arith.constant 0 : index
    %c0_2 = arith.constant 0 : index
    %1 = vector.load %arg2[%c0_1, %c0_2] : memref<1x512xf32, #tpu.memory_space<vmem>>, vector<1x512xf32>
    %cst = arith.constant 2.000000e+00 : f32
    %2 = vector.broadcast %cst : f32 to vector<1x512xf32>
    %3 = arith.mulf %2, %1 : vector<1x512xf32>
    %cst_3 = arith.constant 1.000000e+00 : f32
    %4 = vector.broadcast %cst_3 : f32 to vector<1x512xf32>
    %5 = arith.subf %3, %4 : vector<1x512xf32>
    %6 = arith.mulf %0, %5 : vector<1x512xf32>
    %cst_4 = arith.constant 1.000000e+00 : f32
    %7 = vector.broadcast %cst_4 : f32 to vector<1x512xf32>
    %8 = arith.subf %7, %6 : vector<1x512xf32>
    %9 = tpu.iota {dimensions = array<i32: 1>} : vector<1x512xi32>
    %c512_i32 = arith.constant 512 : i32
    %10 = vector.broadcast %c512_i32 : i32 to vector<1x512xi32>
    %11 = arith.cmpi slt, %9, %10 : vector<1x512xi32>
    %cst_5 = arith.constant -3.000000e+38 : f32
    %12 = vector.broadcast %cst_5 : f32 to vector<1x512xf32>
    %13 = arith.select %11, %8, %12 : vector<1x512xi1>, vector<1x512xf32>
    %c0_6 = arith.constant 0 : index
    %c0_7 = arith.constant 0 : index
    %14 = vector.load %arg3[%c0_6, %c0_7] : memref<1x512xf32, #tpu.memory_space<vmem>>, vector<1x512xf32>
    tpu.vector_store %arg3[%c0_6, %c0_7], %13 {strides = array<i32>} : memref<1x512xf32, #tpu.memory_space<vmem>>, vector<1x512xf32>,
    return
  }
  func.func @transform_0(%arg0: i32) -> (i32, i32) {
    %c0_i32 = arith.constant 0 : i32
    %c0_i32_0 = arith.constant 0 : i32
    %c0_i32_1 = arith.constant 0 : i32
    return %c0_i32, %c0_i32_0 : i32, i32
  }
  func.func @transform_1(%arg0: i32) -> (i32, i32) {
    %c0_i32 = arith.constant 0 : i32
    %c0_i32_0 = arith.constant 0 : i32
    %c0_i32_1 = arith.constant 0 : i32
    return %c0_i32, %c0_i32_0 : i32, i32
  }
  func.func @transform_2(%arg0: i32) -> (i32, i32) {
    %c0_i32 = arith.constant 0 : i32
    %c0_i32_0 = arith.constant 0 : i32
    %c0_i32_1 = arith.constant 0 : i32
    return %c0_i32, %c0_i32_0 : i32, i32
  }
}

module attributes {stable_mosaic.version = 11 : i64} {
  func.func @_lovasz_kernel(%arg0: i32, %arg1: memref<1x512xf32, #tpu.memory_space<vmem>>, %arg2: memref<1x512xf32, #tpu.memory_space<vmem>>, %arg3: memref<1x1xf32, #tpu.memory_space<vmem>>) attributes {dimension_semantics = [#tpu.dimension_semantics<arbitrary>], iteration_bounds = array<i64: 1>, scalar_prefetch = 0 : i64, scratch_operands = 0 : i64, tpu.core_type = #tpu.core_type<tc>, window_params = [{pipeline_mode = #tpu.pipeline_mode<synchronous>, transform_indices = @transform_0, window_bounds = array<i64: 1, 512>}, {pipeline_mode = #tpu.pipeline_mode<synchronous>, transform_indices = @transform_1, window_bounds = array<i64: 1, 512>}, {pipeline_mode = #tpu.pipeline_mode<synchronous>, transform_indices = @transform_2, window_bounds = array<i64: 1, 1>}]} {
    %c0 = arith.constant 0 : index
    %c0_0 = arith.constant 0 : index
    %0 = vector.load %arg1[%c0, %c0_0] : memref<1x512xf32, #tpu.memory_space<vmem>>, vector<1x512xf32>
    %c0_1 = arith.constant 0 : index
    %c0_2 = arith.constant 0 : index
    %1 = vector.load %arg2[%c0_1, %c0_2] : memref<1x512xf32, #tpu.memory_space<vmem>>, vector<1x512xf32>
    %2 = tpu.iota {dimensions = array<i32: 1>} : vector<1x512xi32>
    %3 = arith.sitofp %2 : vector<1x512xi32> to vector<1x512xf32>
    %c512_i32 = arith.constant 512 : i32
    %4 = vector.broadcast %c512_i32 : i32 to vector<1x512xi32>
    %5 = arith.cmpi slt, %2, %4 : vector<1x512xi32>
    %6 = arith.extui %5 : vector<1x512xi1> to vector<1x512xi32>
    %7 = arith.sitofp %6 : vector<1x512xi32> to vector<1x512xf32>
    %8 = arith.mulf %1, %7 : vector<1x512xf32>
    %cst = arith.constant dense<0.000000e+00> : vector<1xf32>
    %9 = vector.multi_reduction <add>, %8, %cst [1] : vector<1x512xf32> to vector<1xf32>
    %10 = vector.shape_cast %9 : vector<1xf32> to vector<1x1xf32>
    %11 = tpu.iota {dimensions = array<i32: 0>} : vector<512x512xi32>
    %12 = tpu.iota {dimensions = array<i32: 1>} : vector<512x512xi32>
    %13 = arith.cmpi sle, %11, %12 : vector<512x512xi32>
    %14 = arith.extui %13 : vector<512x512xi1> to vector<512x512xi32>
    %15 = arith.sitofp %14 : vector<512x512xi32> to vector<512x512xf32>
    %cst_3 = arith.constant dense<0.000000e+00> : vector<1x512xf32>
    %16 = tpu.matmul %8, %15, %cst_3 {dimension_numbers = #tpu.dot_dimension_numbers<[1], [0], [0], [1], [0, 0, 1, 1], [], []>} : vector<1x512xf32>, vector<512x512xf32>, vector<1x512xf32> -> vector<1x512xf32>
    %17 = vector.broadcast %10 : vector<1x1xf32> to vector<1x512xf32>
    %18 = arith.subf %17, %16 : vector<1x512xf32>
    %cst_4 = arith.constant 1.000000e+00 : f32
    %19 = vector.broadcast %cst_4 : f32 to vector<1x512xf32>
    %20 = arith.addf %3, %19 : vector<1x512xf32>
    %21 = vector.broadcast %10 : vector<1x1xf32> to vector<1x512xf32>
    %22 = arith.addf %21, %20 : vector<1x512xf32>
    %23 = arith.subf %22, %16 : vector<1x512xf32>
    %24 = arith.divf %18, %23 : vector<1x512xf32>
    %cst_5 = arith.constant 1.000000e+00 : f32
    %25 = vector.broadcast %cst_5 : f32 to vector<1x512xf32>
    %26 = arith.subf %25, %24 : vector<1x512xf32>
    %27 = arith.subf %16, %8 : vector<1x512xf32>
    %28 = vector.broadcast %10 : vector<1x1xf32> to vector<1x512xf32>
    %29 = arith.subf %28, %27 : vector<1x512xf32>
    %30 = vector.broadcast %10 : vector<1x1xf32> to vector<1x512xf32>
    %31 = arith.addf %30, %3 : vector<1x512xf32>
    %32 = arith.subf %31, %27 : vector<1x512xf32>
    %33 = arith.divf %29, %32 : vector<1x512xf32>
    %cst_6 = arith.constant 1.000000e+00 : f32
    %34 = vector.broadcast %cst_6 : f32 to vector<1x512xf32>
    %35 = arith.subf %34, %33 : vector<1x512xf32>
    %c0_i32 = arith.constant 0 : i32
    %36 = vector.broadcast %c0_i32 : i32 to vector<1x512xi32>
    %37 = arith.cmpi eq, %2, %36 : vector<1x512xi32>
    %cst_7 = arith.constant 0.000000e+00 : f32
    %38 = vector.broadcast %cst_7 : f32 to vector<1x512xf32>
    %39 = arith.select %37, %38, %35 : vector<1x512xi1>, vector<1x512xf32>
    %40 = arith.subf %26, %39 : vector<1x512xf32>
    %cst_8 = arith.constant 0.000000e+00 : f32
    %41 = vector.broadcast %cst_8 : f32 to vector<1x512xf32>
    %42 = arith.cmpf ogt, %0, %41 : vector<1x512xf32>
    %cst_9 = arith.constant 1.000000e+00 : f32
    %43 = vector.broadcast %cst_9 : f32 to vector<1x512xf32>
    %44 = arith.addf %0, %43 : vector<1x512xf32>
    %45 = math.exp %0 : vector<1x512xf32>
    %46 = arith.select %42, %44, %45 : vector<1x512xi1>, vector<1x512xf32>
    %47 = arith.mulf %46, %40 : vector<1x512xf32>
    %48 = arith.mulf %47, %7 : vector<1x512xf32>
    %cst_10 = arith.constant dense<0.000000e+00> : vector<1xf32>
    %49 = vector.multi_reduction <add>, %48, %cst_10 [1] : vector<1x512xf32> to vector<1xf32>
    %50 = vector.shape_cast %49 : vector<1xf32> to vector<1x1xf32>
    %c0_11 = arith.constant 0 : index
    %c0_12 = arith.constant 0 : index
    %51 = vector.load %arg3[%c0_11, %c0_12] : memref<1x1xf32, #tpu.memory_space<vmem>>, vector<1x1xf32>
    tpu.vector_store %arg3[%c0_11, %c0_12], %50 {strides = array<i32>} : memref<1x1xf32, #tpu.memory_space<vmem>>, vector<1x1xf32>,
    return
  }
  func.func @transform_0(%arg0: i32) -> (i32, i32) {
    %c0_i32 = arith.constant 0 : i32
    %c0_i32_0 = arith.constant 0 : i32
    %c0_i32_1 = arith.constant 0 : i32
    return %c0_i32, %c0_i32_0 : i32, i32
  }
  func.func @transform_1(%arg0: i32) -> (i32, i32) {
    %c0_i32 = arith.constant 0 : i32
    %c0_i32_0 = arith.constant 0 : i32
    %c0_i32_1 = arith.constant 0 : i32
    return %c0_i32, %c0_i32_0 : i32, i32
  }
  func.func @transform_2(%arg0: i32) -> (i32, i32) {
    %c0_i32 = arith.constant 0 : i32
    %c0_i32_0 = arith.constant 0 : i32
    %c0_i32_1 = arith.constant 0 : i32
    return %c0_i32, %c0_i32_0 : i32, i32
  }
}

</mosaic_0001>

<llo_original>
// kernel: neg.0
$region0: #{neg.0}
  #allocation0 [shape = 's32[1]{0}', space=sflag, size = 0x4, scoped, tag = 'scoped memory for neg.0']
  %s0 = inlined_call_operand.vmem [shape: f32[1,512], index: 0, kind: input, shape index: {}]
  %s1 = inlined_call_operand.vmem [shape: f32[1,512], index: 1, kind: output, shape index: {}]
  %v2 = vld [vmem:[%s0] sm:$0x1]
  %3 = xla_tuple %v2
  %4 = xla_tuple %3
  %v5 = vxor.u32 %v2, 2147483648
  %6 = xla_tuple %v5
  %7 = vst [vmem:[%s1] sm:$0x1] %v5
  %s8 = scalar_lea.vmem %s0, 1
  %v9 = vld [vmem:[%s8] sm:$0x1]
  %10 = xla_tuple %v9
  %11 = xla_tuple %10
  %v12 = vxor.u32 %v9, 2147483648
  %13 = xla_tuple %v12
  %s14 = scalar_lea.vmem %s1, 1
  %15 = vst [vmem:[%s14] sm:$0x1] %v12
  %s16 = scalar_lea.vmem %s0, 2
  %v17 = vld [vmem:[%s16] sm:$0x1]
  %18 = xla_tuple %v17
  %19 = xla_tuple %18
  %v20 = vxor.u32 %v17, 2147483648
  %21 = xla_tuple %v20
  %s22 = scalar_lea.vmem %s1, 2
  %23 = vst [vmem:[%s22] sm:$0x1] %v20
  %s24 = scalar_lea.vmem %s0, 3
  %v25 = vld [vmem:[%s24] sm:$0x1]
  %26 = xla_tuple %v25
  %27 = xla_tuple %26
  %v28 = vxor.u32 %v25, 2147483648
  %29 = xla_tuple %v28
  %s30 = scalar_lea.vmem %s1, 3
  %31 = vst [vmem:[%s30] sm:$0x1] %v28

// kernel: neg.3
$region0: #{neg.3}
  #allocation0 [shape = 's32[1]{0}', space=sflag, size = 0x4, scoped, tag = 'scoped memory for neg.3']
  %s0 = inlined_call_operand.vmem [shape: f32[512], index: 0, kind: input, shape index: {}]
  %s1 = inlined_call_operand.vmem [shape: f32[512], index: 1, kind: output, shape index: {}]
  %v2 = vld [vmem:[%s0] sm:$0xf]
  %3 = xla_tuple %v2
  %4 = xla_tuple %3
  %v5 = vxor.u32 %v2, 2147483648
  %6 = xla_tuple %v5
  %7 = vst [vmem:[%s1] sm:$0xf] %v5

// kernel: lovasz_loss.2
$region0: #{lovasz_loss.2}
  #allocation0 [shape = 'u32[]', space=smem, size = 0x4, offset = 0x4, fixed_abs, tag = 'smem constant byte address 0x4 - core index']
  #allocation1 [shape = 'u32[144,128]{1,0:T(1,128)}', space=vmem, size = 0x12000, scoped, tag = 'internal scratch']
  %s0 = inlined_call_operand.vmem [shape: f32[1,512], index: 0, kind: input, shape index: {}]
  %s1 = inlined_call_operand.vmem [shape: f32[1,512], index: 1, kind: input, shape index: {}]
  %s2 = inlined_call_operand.vmem [shape: f32[1,512], index: 2, kind: output, shape index: {}]
  %s3 = sld [smem:[#allocation0]]
  $region18: #{lovasz_loss.2} parent=0
    _
  %s5 = ssub.s32 1, %s3
  %s6 = scalar_select 0, %s5, %s3
  // Predicated region
  $region2: #{lovasz_loss.2} parent=0 // pred_check
    _
  $region3: #{lovasz_loss.2} parent=0 // pred_check_branch
    %8 = sbr.rel (0) target = $region5
  $region4: #{lovasz_loss.2} parent=0 // pred_region
    _
  $region5: #{lovasz_loss.2} parent=0 // pred_fallthru
    _
  // Predicated region
  $region6: #{lovasz_loss.2} parent=0 // pred_check
    _
  $region7: #{lovasz_loss.2} parent=0 // pred_check_branch
    %10 = sbr.rel (0) target = $region9
  $region8: #{lovasz_loss.2} parent=0 // pred_region
    _
  $region9: #{lovasz_loss.2} parent=0 // pred_fallthru
    _
  %v11 = vld [vmem:[%s0] sm:$0xf]
  %v12 = vld [vmem:[%s1] sm:$0xf]
  %v13 = vmul.f32 %v12, 2.0
  %v14 = vsub.f32 %v13, 1.0
  %v15 = vmul.f32 %v11, %v14
  %v16 = vsub.f32 1.0, %v15
  %v17 = vlaneseq
  %v18 = vand.u32 %v17, 127
  %v19 = vadd.s32 %v18, 128
  %v20 = vadd.s32 %v18, 256
  %v21 = vadd.s32 %v18, 384
  %vm22 = vcmp.lt.s32.totalorder %v18, 512
  %vm23 = vcmp.lt.s32.totalorder %v19, 512
  %vm24 = vcmp.lt.s32.totalorder %v20, 512
  %vm25 = vcmp.lt.s32.totalorder %v21, 512
  %v27 = vlaneseq
  %v28 = vshrl.u32 %v27, 7
  %v29 = vsub.s32 0, %v28
  %v30 = vrot.slane %v16, %v29
  %v31 = vlaneseq
  %v32 = vshrl.u32 %v31, 7
  %v33 = vsub.s32 1, %v32
  %v34 = vrot.slane %v16, %v33
  %v35 = vlaneseq
  %v36 = vshrl.u32 %v35, 7
  %v37 = vsub.s32 2, %v36
  %v38 = vrot.slane %v16, %v37
  %v39 = vlaneseq
  %v40 = vshrl.u32 %v39, 7
  %v41 = vsub.s32 3, %v40
  %v42 = vrot.slane %v16, %v41
  %v47 = vsel %vm22, %v30, -3e+38
  %v48 = vsel %vm23, %v34, -3e+38
  %v49 = vsel %vm24, %v38, -3e+38
  %v50 = vsel %vm25, %v42, -3e+38
  %v55 = vcombine.low %v47, %v48
  %v56 = vcombine.low %v49, %v50
  %v58 = vunpack.c.l.s4 1966171168
  %v59 = vunpack.c.0.s8 %v58
  %v60 = vlaneseq
  %v61 = vshrl.u32 %v60, 7
  %v62 = vsub.s32 %v59, %v61
  %v63 = vrot.slane %v55, %v62
  %v65 = vunpack.c.l.s4 1966171168
  %v66 = vunpack.c.0.s8 %v65
  %v67 = vlaneseq
  %v68 = vshrl.u32 %v67, 7
  %v69 = vsub.s32 %v66, %v68
  %v70 = vrot.slane %v56, %v69
  %v71 = vcombine.low %v63, %v70
  %v73 = vunpack.c.l.s4 1966171168
  %v74 = vunpack.c.0.s8 %v73
  %v75 = vlaneseq
  %v76 = vshrl.u32 %v75, 7
  %v77 = vsub.s32 %v74, %v76
  %v78 = vrot.slane %v71, %v77
  %v80 = vlaneseq
  %vm81 = vcmp.ge.s32.totalorder %v80, 0
  %vm82 = vcmp.lt.s32.totalorder %v80, 512
  %vm83 = vmand %vm81, %vm82
  %84 = vst.msk [vmem:[%s2] sm:$0xf] %vm83, %v78
  // Predicated region
  $region10: #{lovasz_loss.2} parent=0 // pred_check
    _
  $region11: #{lovasz_loss.2} parent=0 // pred_check_branch
    %86 = sbr.rel (0) target = $region13
  $region12: #{lovasz_loss.2} parent=0 // pred_region
    _
  $region13: #{lovasz_loss.2} parent=0 // pred_fallthru
    _
  // Predicated region
  $region14: #{lovasz_loss.2} parent=0 // pred_check
    _
  $region15: #{lovasz_loss.2} parent=0 // pred_check_branch
    %88 = sbr.rel (0) target = $region17
  $region16: #{lovasz_loss.2} parent=0 // pred_region
    _
  $region17: #{lovasz_loss.2} parent=0 // pred_fallthru
    _

// kernel: lovasz_loss.3
$region0: #{lovasz_loss.3}
  #allocation0 [shape = 'u32[]', space=smem, size = 0x4, offset = 0x4, fixed_abs, tag = 'smem constant byte address 0x4 - core index']
  #allocation1 [shape = 'u32[144,128]{1,0:T(1,128)}', space=vmem, size = 0x12000, scoped, tag = 'internal scratch']
  %s0 = inlined_call_operand.vmem [shape: f32[1,512], index: 0, kind: input, shape index: {}]
  %s1 = inlined_call_operand.vmem [shape: f32[1,512], index: 1, kind: input, shape index: {}]
  %s2 = inlined_call_operand.hbm [shape: f32[1,1], index: 2, kind: output, shape index: {}]
  %s3 = sld [smem:[#allocation0]]
  $region18: #{lovasz_loss.3} parent=0
    _
  %s5 = ssub.s32 1, %s3
  %s6 = scalar_select 0, %s5, %s3
  $region1: #{lovasz_loss.3} parent=0
    #allocation2 [shape = 'u8[512]{0}', space=vmem, size = 0x400, scoped, tag = 'output window, operand 0, single buffered']
    #allocation3 [shape = 's32[1]{0}', space=sflag, size = 0x4, scoped, tag = 'scoped memory for lovasz_loss.3']
    %7 = vsyncpa [#allocation3], 0
    // Predicated region
    $region2: #{lovasz_loss.3} parent=1 // pred_check
      _
    $region3: #{lovasz_loss.3} parent=1 // pred_check_branch
      %9 = sbr.rel (0) target = $region5
    $region4: #{lovasz_loss.3} parent=1 // pred_region
      _
    $region5: #{lovasz_loss.3} parent=1 // pred_fallthru
      _
    // Predicated region
    $region6: #{lovasz_loss.3} parent=1 // pred_check
      _
    $region7: #{lovasz_loss.3} parent=1 // pred_check_branch
      %11 = sbr.rel (0) target = $region9
    $region8: #{lovasz_loss.3} parent=1 // pred_region
      _
    $region9: #{lovasz_loss.3} parent=1 // pred_fallthru
      _
    %v12 = vld [vmem:[%s0] sm:$0xf]
    %v13 = vld [vmem:[%s1] sm:$0xf]
    %v14 = vlaneseq
    %v15 = vand.u32 %v14, 127
    %v16 = vadd.s32 %v15, 128
    %v17 = vadd.s32 %v15, 256
    %v18 = vadd.s32 %v15, 384
    %v19 = vcvt.s32.f32 %v15
    %v20 = vcvt.s32.f32 %v16
    %v21 = vcvt.s32.f32 %v17
    %v22 = vcvt.s32.f32 %v18
    %vm23 = vcmp.lt.s32.totalorder %v15, 512
    %vm24 = vcmp.lt.s32.totalorder %v16, 512
    %vm25 = vcmp.lt.s32.totalorder %v17, 512
    %vm26 = vcmp.lt.s32.totalorder %v18, 512
    %v27 = vsel %vm23, 1, 0
    %v28 = vsel %vm24, 1, 0
    %v29 = vsel %vm25, 1, 0
    %v30 = vsel %vm26, 1, 0
    %v31 = vcvt.s32.f32 %v27
    %v32 = vcvt.s32.f32 %v28
    %v33 = vcvt.s32.f32 %v29
    %v34 = vcvt.s32.f32 %v30
    %v39 = vcombine.low %v31, %v32
    %v40 = vcombine.low %v33, %v34
    %v42 = vunpack.c.l.s4 1966171168
    %v43 = vunpack.c.0.s8 %v42
    %v44 = vlaneseq
    %v45 = vshrl.u32 %v44, 7
    %v46 = vsub.s32 %v43, %v45
    %v47 = vrot.slane %v39, %v46
    %v49 = vunpack.c.l.s4 1966171168
    %v50 = vunpack.c.0.s8 %v49
    %v51 = vlaneseq
    %v52 = vshrl.u32 %v51, 7
    %v53 = vsub.s32 %v50, %v52
    %v54 = vrot.slane %v40, %v53
    %v55 = vcombine.low %v47, %v54
    %v57 = vunpack.c.l.s4 1966171168
    %v58 = vunpack.c.0.s8 %v57
    %v59 = vlaneseq
    %v60 = vshrl.u32 %v59, 7
    %v61 = vsub.s32 %v58, %v60
    %v62 = vrot.slane %v55, %v61
    %v64 = vmul.f32 %v13, %v62
    %v66 = vlaneseq
    %v67 = vshrl.u32 %v66, 7
    %v68 = vsub.s32 0, %v67
    %v69 = vrot.slane %v64, %v68
    %v70 = vlaneseq
    %v71 = vshrl.u32 %v70, 7
    %v72 = vsub.s32 1, %v71
    %v73 = vrot.slane %v64, %v72
    %v74 = vlaneseq
    %v75 = vshrl.u32 %v74, 7
    %v76 = vsub.s32 2, %v75
    %v77 = vrot.slane %v64, %v76
    %v78 = vlaneseq
    %v79 = vshrl.u32 %v78, 7
    %v80 = vsub.s32 3, %v79
    %v81 = vrot.slane %v64, %v80
    %vm86 = vcmask 1040384
    %v87 = vsel %vm86, %v69, 0.0
    %v88 = vsel %vm86, %v73, 0.0
    %v89 = vadd.f32 %v87, %v88
    %v90 = vsel %vm86, %v77, 0.0
    %v91 = vadd.f32 %v89, %v90
    %v92 = vsel %vm86, %v81, 0.0
    %v93 = vadd.f32 %v91, %v92
    %94 = vadd.xlane.f32.xlu0 %v93
    %v95 = vpop.xlane.xlu0 %94
    %v96 = vlaneseq
    %v97 = vshrl.u32 %v96, 7
    %v98 = vadd.s32 %v97, 8
    %v99 = vadd.s32 %v97, 16
    %v100 = vadd.s32 %v97, 24
    %v101 = vadd.s32 %v97, 32
    %v102 = vadd.s32 %v97, 40
    %v103 = vadd.s32 %v97, 48
    %v104 = vadd.s32 %v97, 56
    %v105 = vadd.s32 %v97, 64
    %v106 = vadd.s32 %v97, 72
    %v107 = vadd.s32 %v97, 80
    %v108 = vadd.s32 %v97, 88
    %v109 = vadd.s32 %v97, 96
    %v110 = vadd.s32 %v97, 104
    %v111 = vadd.s32 %v97, 112
    %v112 = vadd.s32 %v97, 120
    %v113 = vadd.s32 %v97, 128
    %v114 = vadd.s32 %v97, 136
    %v115 = vadd.s32 %v97, 144
    %v116 = vadd.s32 %v97, 152
    %v117 = vadd.s32 %v97, 160
    %v118 = vadd.s32 %v97, 168
    %v119 = vadd.s32 %v97, 176
    %v120 = vadd.s32 %v97, 184
    %v121 = vadd.s32 %v97, 192
    %v122 = vadd.s32 %v97, 200
    %v123 = vadd.s32 %v97, 208
    %v124 = vadd.s32 %v97, 216
    %v125 = vadd.s32 %v97, 224
    %v126 = vadd.s32 %v97, 232
    %v127 = vadd.s32 %v97, 240
    %v128 = vadd.s32 %v97, 248
    %v129 = vadd.s32 %v97, 256
    %v130 = vadd.s32 %v97, 264
    %v131 = vadd.s32 %v97, 272
    %v132 = vadd.s32 %v97, 280
    %v133 = vadd.s32 %v97, 288
    %v134 = vadd.s32 %v97, 296
    %v135 = vadd.s32 %v97, 304
    %v136 = vadd.s32 %v97, 312
    %v137 = vadd.s32 %v97, 320
    %v138 = vadd.s32 %v97, 328
    %v139 = vadd.s32 %v97, 336
    %v140 = vadd.s32 %v97, 344
    %v141 = vadd.s32 %v97, 352
    %v142 = vadd.s32 %v97, 360
    %v143 = vadd.s32 %v97, 368
    %v144 = vadd.s32 %v97, 376
    %v145 = vadd.s32 %v97, 384
    %v146 = vadd.s32 %v97, 392
    %v147 = vadd.s32 %v97, 400
    %v148 = vadd.s32 %v97, 408
    %v149 = vadd.s32 %v97, 416
    %v150 = vadd.s32 %v97, 424
    %v151 = vadd.s32 %v97, 432
    %v152 = vadd.s32 %v97, 440
    %v153 = vadd.s32 %v97, 448
    %v154 = vadd.s32 %v97, 456
    %v155 = vadd.s32 %v97, 464
    %v156 = vadd.s32 %v97, 472
    %v157 = vadd.s32 %v97, 480
    %v158 = vadd.s32 %v97, 488
    %v159 = vadd.s32 %v97, 496
    %v160 = vadd.s32 %v97, 504
    %vm161 = vcmp.le.s32.totalorder %v97, %v15
    %vm162 = vcmp.le.s32.totalorder %v97, %v16
    %vm163 = vcmp.le.s32.totalorder %v97, %v17
    %vm164 = vcmp.le.s32.totalorder %v97, %v18
    %vm165 = vcmp.le.s32.totalorder %v98, %v15
    %vm166 = vcmp.le.s32.totalorder %v98, %v16
    %vm167 = vcmp.le.s32.totalorder %v98, %v17
    %vm168 = vcmp.le.s32.totalorder %v98, %v18
    %vm169 = vcmp.le.s32.totalorder %v99, %v15
    %vm170 = vcmp.le.s32.totalorder %v99, %v16
    %vm171 = vcmp.le.s32.totalorder %v99, %v17
    %vm172 = vcmp.le.s32.totalorder %v99, %v18
    %vm173 = vcmp.le.s32.totalorder %v100, %v15
    %vm174 = vcmp.le.s32.totalorder %v100, %v16
    %vm175 = vcmp.le.s32.totalorder %v100, %v17
    %vm176 = vcmp.le.s32.totalorder %v100, %v18
    %vm177 = vcmp.le.s32.totalorder %v101, %v15
    %vm178 = vcmp.le.s32.totalorder %v101, %v16
    %vm179 = vcmp.le.s32.totalorder %v101, %v17
    %vm180 = vcmp.le.s32.totalorder %v101, %v18
    %vm181 = vcmp.le.s32.totalorder %v102, %v15
    %vm182 = vcmp.le.s32.totalorder %v102, %v16
    %vm183 = vcmp.le.s32.totalorder %v102, %v17
    %vm184 = vcmp.le.s32.totalorder %v102, %v18
    %vm185 = vcmp.le.s32.totalorder %v103, %v15
    %vm186 = vcmp.le.s32.totalorder %v103, %v16
    %vm187 = vcmp.le.s32.totalorder %v103, %v17
    %vm188 = vcmp.le.s32.totalorder %v103, %v18
    %vm189 = vcmp.le.s32.totalorder %v104, %v15
    %vm190 = vcmp.le.s32.totalorder %v104, %v16
    %vm191 = vcmp.le.s32.totalorder %v104, %v17
    %vm192 = vcmp.le.s32.totalorder %v104, %v18
    %vm193 = vcmp.le.s32.totalorder %v105, %v15
    %vm194 = vcmp.le.s32.totalorder %v105, %v16
    %vm195 = vcmp.le.s32.totalorder %v105, %v17
    %vm196 = vcmp.le.s32.totalorder %v105, %v18
    %vm197 = vcmp.le.s32.totalorder %v106, %v15
    %vm198 = vcmp.le.s32.totalorder %v106, %v16
    %vm199 = vcmp.le.s32.totalorder %v106, %v17
    %vm200 = vcmp.le.s32.totalorder %v106, %v18
    %vm201 = vcmp.le.s32.totalorder %v107, %v15
    %vm202 = vcmp.le.s32.totalorder %v107, %v16
    %vm203 = vcmp.le.s32.totalorder %v107, %v17
    %vm204 = vcmp.le.s32.totalorder %v107, %v18
    %vm205 = vcmp.le.s32.totalorder %v108, %v15
    %vm206 = vcmp.le.s32.totalorder %v108, %v16
    %vm207 = vcmp.le.s32.totalorder %v108, %v17
    %vm208 = vcmp.le.s32.totalorder %v108, %v18
    %vm209 = vcmp.le.s32.totalorder %v109, %v15
    %vm210 = vcmp.le.s32.totalorder %v109, %v16
    %vm211 = vcmp.le.s32.totalorder %v109, %v17
    %vm212 = vcmp.le.s32.totalorder %v109, %v18
    %vm213 = vcmp.le.s32.totalorder %v110, %v15
    %vm214 = vcmp.le.s32.totalorder %v110, %v16
    %vm215 = vcmp.le.s32.totalorder %v110, %v17
    %vm216 = vcmp.le.s32.totalorder %v110, %v18
    %vm217 = vcmp.le.s32.totalorder %v111, %v15
    %vm218 = vcmp.le.s32.totalorder %v111, %v16
    %vm219 = vcmp.le.s32.totalorder %v111, %v17
    %vm220 = vcmp.le.s32.totalorder %v111, %v18
    %vm221 = vcmp.le.s32.totalorder %v112, %v15
    %vm222 = vcmp.le.s32.totalorder %v112, %v16
    %vm223 = vcmp.le.s32.totalorder %v112, %v17
    %vm224 = vcmp.le.s32.totalorder %v112, %v18
    %vm225 = vcmp.le.s32.totalorder %v113, %v15
    %vm226 = vcmp.le.s32.totalorder %v113, %v16
    %vm227 = vcmp.le.s32.totalorder %v113, %v17
    %vm228 = vcmp.le.s32.totalorder %v113, %v18
    %vm229 = vcmp.le.s32.totalorder %v114, %v15
    %vm230 = vcmp.le.s32.totalorder %v114, %v16
    %vm231 = vcmp.le.s32.totalorder %v114, %v17
    %vm232 = vcmp.le.s32.totalorder %v114, %v18
    %vm233 = vcmp.le.s32.totalorder %v115, %v15
    %vm234 = vcmp.le.s32.totalorder %v115, %v16
    %vm235 = vcmp.le.s32.totalorder %v115, %v17
    %vm236 = vcmp.le.s32.totalorder %v115, %v18
    %vm237 = vcmp.le.s32.totalorder %v116, %v15
    %vm238 = vcmp.le.s32.totalorder %v116, %v16
    %vm239 = vcmp.le.s32.totalorder %v116, %v17
    %vm240 = vcmp.le.s32.totalorder %v116, %v18
    %vm241 = vcmp.le.s32.totalorder %v117, %v15
    %vm242 = vcmp.le.s32.totalorder %v117, %v16
    %vm243 = vcmp.le.s32.totalorder %v117, %v17
    %vm244 = vcmp.le.s32.totalorder %v117, %v18
    %vm245 = vcmp.le.s32.totalorder %v118, %v15
    %vm246 = vcmp.le.s32.totalorder %v118, %v16
    %vm247 = vcmp.le.s32.totalorder %v118, %v17
    %vm248 = vcmp.le.s32.totalorder %v118, %v18
    %vm249 = vcmp.le.s32.totalorder %v119, %v15
    %vm250 = vcmp.le.s32.totalorder %v119, %v16
    %vm251 = vcmp.le.s32.totalorder %v119, %v17
    %vm252 = vcmp.le.s32.totalorder %v119, %v18
    %vm253 = vcmp.le.s32.totalorder %v120, %v15
    %vm254 = vcmp.le.s32.totalorder %v120, %v16
    %vm255 = vcmp.le.s32.totalorder %v120, %v17
    %vm256 = vcmp.le.s32.totalorder %v120, %v18
    %vm257 = vcmp.le.s32.totalorder %v121, %v15
    %vm258 = vcmp.le.s32.totalorder %v121, %v16
    %vm259 = vcmp.le.s32.totalorder %v121, %v17
    %vm260 = vcmp.le.s32.totalorder %v121, %v18
    %vm261 = vcmp.le.s32.totalorder %v122, %v15
    %vm262 = vcmp.le.s32.totalorder %v122, %v16
    %vm263 = vcmp.le.s32.totalorder %v122, %v17
    %vm264 = vcmp.le.s32.totalorder %v122, %v18
    %vm265 = vcmp.le.s32.totalorder %v123, %v15
    %vm266 = vcmp.le.s32.totalorder %v123, %v16
    %vm267 = vcmp.le.s32.totalorder %v123, %v17
    %vm268 = vcmp.le.s32.totalorder %v123, %v18
    %vm269 = vcmp.le.s32.totalorder %v124, %v15
    %vm270 = vcmp.le.s32.totalorder %v124, %v16
    %vm271 = vcmp.le.s32.totalorder %v124, %v17
    %vm272 = vcmp.le.s32.totalorder %v124, %v18
    %vm273 = vcmp.le.s32.totalorder %v125, %v15
    %vm274 = vcmp.le.s32.totalorder %v125, %v16
    %vm275 = vcmp.le.s32.totalorder %v125, %v17
    %vm276 = vcmp.le.s32.totalorder %v125, %v18
    %vm277 = vcmp.le.s32.totalorder %v126, %v15
    %vm278 = vcmp.le.s32.totalorder %v126, %v16
    %vm279 = vcmp.le.s32.totalorder %v126, %v17
    %vm280 = vcmp.le.s32.totalorder %v126, %v18
    %vm281 = vcmp.le.s32.totalorder %v127, %v15
    %vm282 = vcmp.le.s32.totalorder %v127, %v16
    %vm283 = vcmp.le.s32.totalorder %v127, %v17
    %vm284 = vcmp.le.s32.totalorder %v127, %v18
    %vm285 = vcmp.le.s32.totalorder %v128, %v15
    %vm286 = vcmp.le.s32.totalorder %v128, %v16
    %vm287 = vcmp.le.s32.totalorder %v128, %v17
    %vm288 = vcmp.le.s32.totalorder %v128, %v18
    %vm289 = vcmp.le.s32.totalorder %v129, %v15
    %vm290 = vcmp.le.s32.totalorder %v129, %v16
    %vm291 = vcmp.le.s32.totalorder %v129, %v17
    %vm292 = vcmp.le.s32.totalorder %v129, %v18
    %vm293 = vcmp.le.s32.totalorder %v130, %v15
    %vm294 = vcmp.le.s32.totalorder %v130, %v16
    %vm295 = vcmp.le.s32.totalorder %v130, %v17
    %vm296 = vcmp.le.s32.totalorder %v130, %v18
    %vm297 = vcmp.le.s32.totalorder %v131, %v15
    %vm298 = vcmp.le.s32.totalorder %v131, %v16
    %vm299 = vcmp.le.s32.totalorder %v131, %v17
    %vm300 = vcmp.le.s32.totalorder %v131, %v18
    %vm301 = vcmp.le.s32.totalorder %v132, %v15
    %vm302 = vcmp.le.s32.totalorder %v132, %v16
    %vm303 = vcmp.le.s32.totalorder %v132, %v17
    %vm304 = vcmp.le.s32.totalorder %v132, %v18
    %vm305 = vcmp.le.s32.totalorder %v133, %v15
    %vm306 = vcmp.le.s32.totalorder %v133, %v16
    %vm307 = vcmp.le.s32.totalorder %v133, %v17
    %vm308 = vcmp.le.s32.totalorder %v133, %v18
    %vm309 = vcmp.le.s32.totalorder %v134, %v15
    %vm310 = vcmp.le.s32.totalorder %v134, %v16
    %vm311 = vcmp.le.s32.totalorder %v134, %v17
    %vm312 = vcmp.le.s32.totalorder %v134, %v18
    %vm313 = vcmp.le.s32.totalorder %v135, %v15
    %vm314 = vcmp.le.s32.totalorder %v135, %v16
    %vm315 = vcmp.le.s32.totalorder %v135, %v17
    %vm316 = vcmp.le.s32.totalorder %v135, %v18
    %vm317 = vcmp.le.s32.totalorder %v136, %v15
    %vm318 = vcmp.le.s32.totalorder %v136, %v16
    %vm319 = vcmp.le.s32.totalorder %v136, %v17
    %vm320 = vcmp.le.s32.totalorder %v136, %v18
    %vm321 = vcmp.le.s32.totalorder %v137, %v15
    %vm322 = vcmp.le.s32.totalorder %v137, %v16
    %vm323 = vcmp.le.s32.totalorder %v137, %v17
    %vm324 = vcmp.le.s32.totalorder %v137, %v18
    %vm325 = vcmp.le.s32.totalorder %v138, %v15
    %vm326 = vcmp.le.s32.totalorder %v138, %v16
    %vm327 = vcmp.le.s32.totalorder %v138, %v17
    %vm328 = vcmp.le.s32.totalorder %v138, %v18
    %vm329 = vcmp.le.s32.totalorder %v139, %v15
    %vm330 = vcmp.le.s32.totalorder %v139, %v16
    %vm331 = vcmp.le.s32.totalorder %v139, %v17
    %vm332 = vcmp.le.s32.totalorder %v139, %v18
    %vm333 = vcmp.le.s32.totalorder %v140, %v15
    %vm334 = vcmp.le.s32.totalorder %v140, %v16
    %vm335 = vcmp.le.s32.totalorder %v140, %v17
    %vm336 = vcmp.le.s32.totalorder %v140, %v18
    %vm337 = vcmp.le.s32.totalorder %v141, %v15
    %vm338 = vcmp.le.s32.totalorder %v141, %v16
    %vm339 = vcmp.le.s32.totalorder %v141, %v17
    %vm340 = vcmp.le.s32.totalorder %v141, %v18
    %vm341 = vcmp.le.s32.totalorder %v142, %v15
    %vm342 = vcmp.le.s32.totalorder %v142, %v16
    %vm343 = vcmp.le.s32.totalorder %v142, %v17
    %vm344 = vcmp.le.s32.totalorder %v142, %v18
    %vm345 = vcmp.le.s32.totalorder %v143, %v15
    %vm346 = vcmp.le.s32.totalorder %v143, %v16
    %vm347 = vcmp.le.s32.totalorder %v143, %v17
    %vm348 = vcmp.le.s32.totalorder %v143, %v18
    %vm349 = vcmp.le.s32.totalorder %v144, %v15
    %vm350 = vcmp.le.s32.totalorder %v144, %v16
    %vm351 = vcmp.le.s32.totalorder %v144, %v17
    %vm352 = vcmp.le.s32.totalorder %v144, %v18
    %vm353 = vcmp.le.s32.totalorder %v145, %v15
    %vm354 = vcmp.le.s32.totalorder %v145, %v16
    %vm355 = vcmp.le.s32.totalorder %v145, %v17
    %vm356 = vcmp.le.s32.totalorder %v145, %v18
    %vm357 = vcmp.le.s32.totalorder %v146, %v15
    %vm358 = vcmp.le.s32.totalorder %v146, %v16
    %vm359 = vcmp.le.s32.totalorder %v146, %v17
    %vm360 = vcmp.le.s32.totalorder %v146, %v18
    %vm361 = vcmp.le.s32.totalorder %v147, %v15
    %vm362 = vcmp.le.s32.totalorder %v147, %v16
    %vm363 = vcmp.le.s32.totalorder %v147, %v17
    %vm364 = vcmp.le.s32.totalorder %v147, %v18
    %vm365 = vcmp.le.s32.totalorder %v148, %v15
    %vm366 = vcmp.le.s32.totalorder %v148, %v16
    %vm367 = vcmp.le.s32.totalorder %v148, %v17
    %vm368 = vcmp.le.s32.totalorder %v148, %v18
    %vm369 = vcmp.le.s32.totalorder %v149, %v15
    %vm370 = vcmp.le.s32.totalorder %v149, %v16
    %vm371 = vcmp.le.s32.totalorder %v149, %v17
    %vm372 = vcmp.le.s32.totalorder %v149, %v18
    %vm373 = vcmp.le.s32.totalorder %v150, %v15
    %vm374 = vcmp.le.s32.totalorder %v150, %v16
    %vm375 = vcmp.le.s32.totalorder %v150, %v17
    %vm376 = vcmp.le.s32.totalorder %v150, %v18
    %vm377 = vcmp.le.s32.totalorder %v151, %v15
    %vm378 = vcmp.le.s32.totalorder %v151, %v16
    %vm379 = vcmp.le.s32.totalorder %v151, %v17
    %vm380 = vcmp.le.s32.totalorder %v151, %v18
    %vm381 = vcmp.le.s32.totalorder %v152, %v15
    %vm382 = vcmp.le.s32.totalorder %v152, %v16
    %vm383 = vcmp.le.s32.totalorder %v152, %v17
    %vm384 = vcmp.le.s32.totalorder %v152, %v18
    %vm385 = vcmp.le.s32.totalorder %v153, %v15
    %vm386 = vcmp.le.s32.totalorder %v153, %v16
    %vm387 = vcmp.le.s32.totalorder %v153, %v17
    %vm388 = vcmp.le.s32.totalorder %v153, %v18
    %vm389 = vcmp.le.s32.totalorder %v154, %v15
    %vm390 = vcmp.le.s32.totalorder %v154, %v16
    %vm391 = vcmp.le.s32.totalorder %v154, %v17
    %vm392 = vcmp.le.s32.totalorder %v154, %v18
    %vm393 = vcmp.le.s32.totalorder %v155, %v15
    %vm394 = vcmp.le.s32.totalorder %v155, %v16
    %vm395 = vcmp.le.s32.totalorder %v155, %v17
    %vm396 = vcmp.le.s32.totalorder %v155, %v18
    %vm397 = vcmp.le.s32.totalorder %v156, %v15
    %vm398 = vcmp.le.s32.totalorder %v156, %v16
    %vm399 = vcmp.le.s32.totalorder %v156, %v17
    %vm400 = vcmp.le.s32.totalorder %v156, %v18
    %vm401 = vcmp.le.s32.totalorder %v157, %v15
    %vm402 = vcmp.le.s32.totalorder %v157, %v16
    %vm403 = vcmp.le.s32.totalorder %v157, %v17
    %vm404 = vcmp.le.s32.totalorder %v157, %v18
    %vm405 = vcmp.le.s32.totalorder %v158, %v15
    %vm406 = vcmp.le.s32.totalorder %v158, %v16
    %vm407 = vcmp.le.s32.totalorder %v158, %v17
    %vm408 = vcmp.le.s32.totalorder %v158, %v18
    %vm409 = vcmp.le.s32.totalorder %v159, %v15
    %vm410 = vcmp.le.s32.totalorder %v159, %v16
    %vm411 = vcmp.le.s32.totalorder %v159, %v17
    %vm412 = vcmp.le.s32.totalorder %v159, %v18
    %vm413 = vcmp.le.s32.totalorder %v160, %v15
    %vm414 = vcmp.le.s32.totalorder %v160, %v16
    %vm415 = vcmp.le.s32.totalorder %v160, %v17
    %vm416 = vcmp.le.s32.totalorder %v160, %v18
    %v417 = vsel %vm161, 1, 0
    %v418 = vsel %vm162, 1, 0
    %v419 = vsel %vm163, 1, 0
    %v420 = vsel %vm164, 1, 0
    %v421 = vsel %vm165, 1, 0
    %v422 = vsel %vm166, 1, 0
    %v423 = vsel %vm167, 1, 0
    %v424 = vsel %vm168, 1, 0
    %v425 = vsel %vm169, 1, 0
    %v426 = vsel %vm170, 1, 0
    %v427 = vsel %vm171, 1, 0
    %v428 = vsel %vm172, 1, 0
    %v429 = vsel %vm173, 1, 0
    %v430 = vsel %vm174, 1, 0
    %v431 = vsel %vm175, 1, 0
    %v432 = vsel %vm176, 1, 0
    %v433 = vsel %vm177, 1, 0
    %v434 = vsel %vm178, 1, 0
    %v435 = vsel %vm179, 1, 0
    %v436 = vsel %vm180, 1, 0
    %v437 = vsel %vm181, 1, 0
    %v438 = vsel %vm182, 1, 0
    %v439 = vsel %vm183, 1, 0
    %v440 = vsel %vm184, 1, 0
    %v441 = vsel %vm185, 1, 0
    %v442 = vsel %vm186, 1, 0
    %v443 = vsel %vm187, 1, 0
    %v444 = vsel %vm188, 1, 0
    %v445 = vsel %vm189, 1, 0
    %v446 = vsel %vm190, 1, 0
    %v447 = vsel %vm191, 1, 0
    %v448 = vsel %vm192, 1, 0
    %v449 = vsel %vm193, 1, 0
    %v450 = vsel %vm194, 1, 0
    %v451 = vsel %vm195, 1, 0
    %v452 = vsel %vm196, 1, 0
    %v453 = vsel %vm197, 1, 0
    %v454 = vsel %vm198, 1, 0
    %v455 = vsel %vm199, 1, 0
    %v456 = vsel %vm200, 1, 0
    %v457 = vsel %vm201, 1, 0
    %v458 = vsel %vm202, 1, 0
    %v459 = vsel %vm203, 1, 0
    %v460 = vsel %vm204, 1, 0
    %v461 = vsel %vm205, 1, 0
    %v462 = vsel %vm206, 1, 0
    %v463 = vsel %vm207, 1, 0
    %v464 = vsel %vm208, 1, 0
    %v465 = vsel %vm209, 1, 0
    %v466 = vsel %vm210, 1, 0
    %v467 = vsel %vm211, 1, 0
    %v468 = vsel %vm212, 1, 0
    %v469 = vsel %vm213, 1, 0
    %v470 = vsel %vm214, 1, 0
    %v471 = vsel %vm215, 1, 0
    %v472 = vsel %vm216, 1, 0
    %v473 = vsel %vm217, 1, 0
    %v474 = vsel %vm218, 1, 0
    %v475 = vsel %vm219, 1, 0
    %v476 = vsel %vm220, 1, 0
    %v477 = vsel %vm221, 1, 0
    %v478 = vsel %vm222, 1, 0
    %v479 = vsel %vm223, 1, 0
    %v480 = vsel %vm224, 1, 0
    %v481 = vsel %vm225, 1, 0
    %v482 = vsel %vm226, 1, 0
    %v483 = vsel %vm227, 1, 0
    %v484 = vsel %vm228, 1, 0
    %v485 = vsel %vm229, 1, 0
    %v486 = vsel %vm230, 1, 0
    %v487 = vsel %vm231, 1, 0
    %v488 = vsel %vm232, 1, 0
    %v489 = vsel %vm233, 1, 0
    %v490 = vsel %vm234, 1, 0
    %v491 = vsel %vm235, 1, 0
    %v492 = vsel %vm236, 1, 0
    %v493 = vsel %vm237, 1, 0
    %v494 = vsel %vm238, 1, 0
    %v495 = vsel %vm239, 1, 0
    %v496 = vsel %vm240, 1, 0
    %v497 = vsel %vm241, 1, 0
    %v498 = vsel %vm242, 1, 0
    %v499 = vsel %vm243, 1, 0
    %v500 = vsel %vm244, 1, 0
    %v501 = vsel %vm245, 1, 0
    %v502 = vsel %vm246, 1, 0
    %v503 = vsel %vm247, 1, 0
    %v504 = vsel %vm248, 1, 0
    %v505 = vsel %vm249, 1, 0
    %v506 = vsel %vm250, 1, 0
    %v507 = vsel %vm251, 1, 0
    %v508 = vsel %vm252, 1, 0
    %v509 = vsel %vm253, 1, 0
    %v510 = vsel %vm254, 1, 0
    %v511 = vsel %vm255, 1, 0
    %v512 = vsel %vm256, 1, 0
    %v513 = vsel %vm257, 1, 0
    %v514 = vsel %vm258, 1, 0
    %v515 = vsel %vm259, 1, 0
    %v516 = vsel %vm260, 1, 0
    %v517 = vsel %vm261, 1, 0
    %v518 = vsel %vm262, 1, 0
    %v519 = vsel %vm263, 1, 0
    %v520 = vsel %vm264, 1, 0
    %v521 = vsel %vm265, 1, 0
    %v522 = vsel %vm266, 1, 0
    %v523 = vsel %vm267, 1, 0
    %v524 = vsel %vm268, 1, 0
    %v525 = vsel %vm269, 1, 0
    %v526 = vsel %vm270, 1, 0
    %v527 = vsel %vm271, 1, 0
    %v528 = vsel %vm272, 1, 0
    %v529 = vsel %vm273, 1, 0
    %v530 = vsel %vm274, 1, 0
    %v531 = vsel %vm275, 1, 0
    %v532 = vsel %vm276, 1, 0
    %v533 = vsel %vm277, 1, 0
    %v534 = vsel %vm278, 1, 0
    %v535 = vsel %vm279, 1, 0
    %v536 = vsel %vm280, 1, 0
    %v537 = vsel %vm281, 1, 0
    %v538 = vsel %vm282, 1, 0
    %v539 = vsel %vm283, 1, 0
    %v540 = vsel %vm284, 1, 0
    %v541 = vsel %vm285, 1, 0
    %v542 = vsel %vm286, 1, 0
    %v543 = vsel %vm287, 1, 0
    %v544 = vsel %vm288, 1, 0
    %v545 = vsel %vm289, 1, 0
    %v546 = vsel %vm290, 1, 0
    %v547 = vsel %vm291, 1, 0
    %v548 = vsel %vm292, 1, 0
    %v549 = vsel %vm293, 1, 0
    %v550 = vsel %vm294, 1, 0
    %v551 = vsel %vm295, 1, 0
    %v552 = vsel %vm296, 1, 0
    %v553 = vsel %vm297, 1, 0
    %v554 = vsel %vm298, 1, 0
    %v555 = vsel %vm299, 1, 0
    %v556 = vsel %vm300, 1, 0
    %v557 = vsel %vm301, 1, 0
    %v558 = vsel %vm302, 1, 0
    %v559 = vsel %vm303, 1, 0
    %v560 = vsel %vm304, 1, 0
    %v561 = vsel %vm305, 1, 0
    %v562 = vsel %vm306, 1, 0
    %v563 = vsel %vm307, 1, 0
    %v564 = vsel %vm308, 1, 0
    %v565 = vsel %vm309, 1, 0
    %v566 = vsel %vm310, 1, 0
    %v567 = vsel %vm311, 1, 0
    %v568 = vsel %vm312, 1, 0
    %v569 = vsel %vm313, 1, 0
    %v570 = vsel %vm314, 1, 0
    %v571 = vsel %vm315, 1, 0
    %v572 = vsel %vm316, 1, 0
    %v573 = vsel %vm317, 1, 0
    %v574 = vsel %vm318, 1, 0
    %v575 = vsel %vm319, 1, 0
    %v576 = vsel %vm320, 1, 0
    %v577 = vsel %vm321, 1, 0
    %v578 = vsel %vm322, 1, 0
    %v579 = vsel %vm323, 1, 0
    %v580 = vsel %vm324, 1, 0
    %v581 = vsel %vm325, 1, 0
    %v582 = vsel %vm326, 1, 0
    %v583 = vsel %vm327, 1, 0
    %v584 = vsel %vm328, 1, 0
    %v585 = vsel %vm329, 1, 0
    %v586 = vsel %vm330, 1, 0
    %v587 = vsel %vm331, 1, 0
    %v588 = vsel %vm332, 1, 0
    %v589 = vsel %vm333, 1, 0
    %v590 = vsel %vm334, 1, 0
    %v591 = vsel %vm335, 1, 0
    %v592 = vsel %vm336, 1, 0
    %v593 = vsel %vm337, 1, 0
    %v594 = vsel %vm338, 1, 0
    %v595 = vsel %vm339, 1, 0
    %v596 = vsel %vm340, 1, 0
    %v597 = vsel %vm341, 1, 0
    %v598 = vsel %vm342, 1, 0
    %v599 = vsel %vm343, 1, 0
    %v600 = vsel %vm344, 1, 0
    %v601 = vsel %vm345, 1, 0
    %v602 = vsel %vm346, 1, 0
    %v603 = vsel %vm347, 1, 0
    %v604 = vsel %vm348, 1, 0
    %v605 = vsel %vm349, 1, 0
    %v606 = vsel %vm350, 1, 0
    %v607 = vsel %vm351, 1, 0
    %v608 = vsel %vm352, 1, 0
    %v609 = vsel %vm353, 1, 0
    %v610 = vsel %vm354, 1, 0
    %v611 = vsel %vm355, 1, 0
    %v612 = vsel %vm356, 1, 0
    %v613 = vsel %vm357, 1, 0
    %v614 = vsel %vm358, 1, 0
    %v615 = vsel %vm359, 1, 0
    %v616 = vsel %vm360, 1, 0
    %v617 = vsel %vm361, 1, 0
    %v618 = vsel %vm362, 1, 0
    %v619 = vsel %vm363, 1, 0
    %v620 = vsel %vm364, 1, 0
    %v621 = vsel %vm365, 1, 0
    %v622 = vsel %vm366, 1, 0
    %v623 = vsel %vm367, 1, 0
    %v624 = vsel %vm368, 1, 0
    %v625 = vsel %vm369, 1, 0
    %v626 = vsel %vm370, 1, 0
    %v627 = vsel %vm371, 1, 0
    %v628 = vsel %vm372, 1, 0
    %v629 = vsel %vm373, 1, 0
    %v630 = vsel %vm374, 1, 0
    %v631 = vsel %vm375, 1, 0
    %v632 = vsel %vm376, 1, 0
    %v633 = vsel %vm377, 1, 0
    %v634 = vsel %vm378, 1, 0
    %v635 = vsel %vm379, 1, 0
    %v636 = vsel %vm380, 1, 0
    %v637 = vsel %vm381, 1, 0
    %v638 = vsel %vm382, 1, 0
    %v639 = vsel %vm383, 1, 0
    %v640 = vsel %vm384, 1, 0
    %v641 = vsel %vm385, 1, 0
    %v642 = vsel %vm386, 1, 0
    %v643 = vsel %vm387, 1, 0
    %v644 = vsel %vm388, 1, 0
    %v645 = vsel %vm389, 1, 0
    %v646 = vsel %vm390, 1, 0
    %v647 = vsel %vm391, 1, 0
    %v648 = vsel %vm392, 1, 0
    %v649 = vsel %vm393, 1, 0
    %v650 = vsel %vm394, 1, 0
    %v651 = vsel %vm395, 1, 0
    %v652 = vsel %vm396, 1, 0
    %v653 = vsel %vm397, 1, 0
    %v654 = vsel %vm398, 1, 0
    %v655 = vsel %vm399, 1, 0
    %v656 = vsel %vm400, 1, 0
    %v657 = vsel %vm401, 1, 0
    %v658 = vsel %vm402, 1, 0
    %v659 = vsel %vm403, 1, 0
    %v660 = vsel %vm404, 1, 0
    %v661 = vsel %vm405, 1, 0
    %v662 = vsel %vm406, 1, 0
    %v663 = vsel %vm407, 1, 0
    %v664 = vsel %vm408, 1, 0
    %v665 = vsel %vm409, 1, 0
    %v666 = vsel %vm410, 1, 0
    %v667 = vsel %vm411, 1, 0
    %v668 = vsel %vm412, 1, 0
    %v669 = vsel %vm413, 1, 0
    %v670 = vsel %vm414, 1, 0
    %v671 = vsel %vm415, 1, 0
    %v672 = vsel %vm416, 1, 0
    %v673 = vcvt.s32.f32 %v417
    %v674 = vcvt.s32.f32 %v418
    %v675 = vcvt.s32.f32 %v419
    %v676 = vcvt.s32.f32 %v420
    %v677 = vcvt.s32.f32 %v421
    %v678 = vcvt.s32.f32 %v422
    %v679 = vcvt.s32.f32 %v423
    %v680 = vcvt.s32.f32 %v424
    %v681 = vcvt.s32.f32 %v425
    %v682 = vcvt.s32.f32 %v426
    %v683 = vcvt.s32.f32 %v427
    %v684 = vcvt.s32.f32 %v428
    %v685 = vcvt.s32.f32 %v429
    %v686 = vcvt.s32.f32 %v430
    %v687 = vcvt.s32.f32 %v431
    %v688 = vcvt.s32.f32 %v432
    %v689 = vcvt.s32.f32 %v433
    %v690 = vcvt.s32.f32 %v434
    %v691 = vcvt.s32.f32 %v435
    %v692 = vcvt.s32.f32 %v436
    %v693 = vcvt.s32.f32 %v437
    %v694 = vcvt.s32.f32 %v438
    %v695 = vcvt.s32.f32 %v439
    %v696 = vcvt.s32.f32 %v440
    %v697 = vcvt.s32.f32 %v441
    %v698 = vcvt.s32.f32 %v442
    %v699 = vcvt.s32.f32 %v443
    %v700 = vcvt.s32.f32 %v444
    %v701 = vcvt.s32.f32 %v445
    %v702 = vcvt.s32.f32 %v446
    %v703 = vcvt.s32.f32 %v447
    %v704 = vcvt.s32.f32 %v448
    %v705 = vcvt.s32.f32 %v449
    %v706 = vcvt.s32.f32 %v450
    %v707 = vcvt.s32.f32 %v451
    %v708 = vcvt.s32.f32 %v452
    %v709 = vcvt.s32.f32 %v453
    %v710 = vcvt.s32.f32 %v454
    %v711 = vcvt.s32.f32 %v455
    %v712 = vcvt.s32.f32 %v456
    %v713 = vcvt.s32.f32 %v457
    %v714 = vcvt.s32.f32 %v458
    %v715 = vcvt.s32.f32 %v459
    %v716 = vcvt.s32.f32 %v460
    %v717 = vcvt.s32.f32 %v461
    %v718 = vcvt.s32.f32 %v462
    %v719 = vcvt.s32.f32 %v463
    %v720 = vcvt.s32.f32 %v464
    %v721 = vcvt.s32.f32 %v465
    %v722 = vcvt.s32.f32 %v466
    %v723 = vcvt.s32.f32 %v467
    %v724 = vcvt.s32.f32 %v468
    %v725 = vcvt.s32.f32 %v469
    %v726 = vcvt.s32.f32 %v470
    %v727 = vcvt.s32.f32 %v471
    %v728 = vcvt.s32.f32 %v472
    %v729 = vcvt.s32.f32 %v473
    %v730 = vcvt.s32.f32 %v474
    %v731 = vcvt.s32.f32 %v475
    %v732 = vcvt.s32.f32 %v476
    %v733 = vcvt.s32.f32 %v477
    %v734 = vcvt.s32.f32 %v478
    %v735 = vcvt.s32.f32 %v479
    %v736 = vcvt.s32.f32 %v480
    %v737 = vcvt.s32.f32 %v481
    %v738 = vcvt.s32.f32 %v482
    %v739 = vcvt.s32.f32 %v483
    %v740 = vcvt.s32.f32 %v484
    %v741 = vcvt.s32.f32 %v485
    %v742 = vcvt.s32.f32 %v486
    %v743 = vcvt.s32.f32 %v487
    %v744 = vcvt.s32.f32 %v488
    %v745 = vcvt.s32.f32 %v489
    %v746 = vcvt.s32.f32 %v490
    %v747 = vcvt.s32.f32 %v491
    %v748 = vcvt.s32.f32 %v492
    %v749 = vcvt.s32.f32 %v493
    %v750 = vcvt.s32.f32 %v494
    %v751 = vcvt.s32.f32 %v495
    %v752 = vcvt.s32.f32 %v496
    %v753 = vcvt.s32.f32 %v497
    %v754 = vcvt.s32.f32 %v498
    %v755 = vcvt.s32.f32 %v499
    %v756 = vcvt.s32.f32 %v500
    %v757 = vcvt.s32.f32 %v501
    %v758 = vcvt.s32.f32 %v502
    %v759 = vcvt.s32.f32 %v503
    %v760 = vcvt.s32.f32 %v504
    %v761 = vcvt.s32.f32 %v505
    %v762 = vcvt.s32.f32 %v506
    %v763 = vcvt.s32.f32 %v507
    %v764 = vcvt.s32.f32 %v508
    %v765 = vcvt.s32.f32 %v509
    %v766 = vcvt.s32.f32 %v510
    %v767 = vcvt.s32.f32 %v511
    %v768 = vcvt.s32.f32 %v512
    %v769 = vcvt.s32.f32 %v513
    %v770 = vcvt.s32.f32 %v514
    %v771 = vcvt.s32.f32 %v515
    %v772 = vcvt.s32.f32 %v516
    %v773 = vcvt.s32.f32 %v517
    %v774 = vcvt.s32.f32 %v518
    %v775 = vcvt.s32.f32 %v519
    %v776 = vcvt.s32.f32 %v520
    %v777 = vcvt.s32.f32 %v521
    %v778 = vcvt.s32.f32 %v522
    %v779 = vcvt.s32.f32 %v523
    %v780 = vcvt.s32.f32 %v524
    %v781 = vcvt.s32.f32 %v525
    %v782 = vcvt.s32.f32 %v526
    %v783 = vcvt.s32.f32 %v527
    %v784 = vcvt.s32.f32 %v528
    %v785 = vcvt.s32.f32 %v529
    %v786 = vcvt.s32.f32 %v530
    %v787 = vcvt.s32.f32 %v531
    %v788 = vcvt.s32.f32 %v532
    %v789 = vcvt.s32.f32 %v533
    %v790 = vcvt.s32.f32 %v534
    %v791 = vcvt.s32.f32 %v535
    %v792 = vcvt.s32.f32 %v536
    %v793 = vcvt.s32.f32 %v537
    %v794 = vcvt.s32.f32 %v538
    %v795 = vcvt.s32.f32 %v539
    %v796 = vcvt.s32.f32 %v540
    %v797 = vcvt.s32.f32 %v541
    %v798 = vcvt.s32.f32 %v542
    %v799 = vcvt.s32.f32 %v543
    %v800 = vcvt.s32.f32 %v544
    %v801 = vcvt.s32.f32 %v545
    %v802 = vcvt.s32.f32 %v546
    %v803 = vcvt.s32.f32 %v547
    %v804 = vcvt.s32.f32 %v548
    %v805 = vcvt.s32.f32 %v549
    %v806 = vcvt.s32.f32 %v550
    %v807 = vcvt.s32.f32 %v551
    %v808 = vcvt.s32.f32 %v552
    %v809 = vcvt.s32.f32 %v553
    %v810 = vcvt.s32.f32 %v554
    %v811 = vcvt.s32.f32 %v555
    %v812 = vcvt.s32.f32 %v556
    %v813 = vcvt.s32.f32 %v557
    %v814 = vcvt.s32.f32 %v558
    %v815 = vcvt.s32.f32 %v559
    %v816 = vcvt.s32.f32 %v560
    %v817 = vcvt.s32.f32 %v561
    %v818 = vcvt.s32.f32 %v562
    %v819 = vcvt.s32.f32 %v563
    %v820 = vcvt.s32.f32 %v564
    %v821 = vcvt.s32.f32 %v565
    %v822 = vcvt.s32.f32 %v566
    %v823 = vcvt.s32.f32 %v567
    %v824 = vcvt.s32.f32 %v568
    %v825 = vcvt.s32.f32 %v569
    %v826 = vcvt.s32.f32 %v570
    %v827 = vcvt.s32.f32 %v571
    %v828 = vcvt.s32.f32 %v572
    %v829 = vcvt.s32.f32 %v573
    %v830 = vcvt.s32.f32 %v574
    %v831 = vcvt.s32.f32 %v575
    %v832 = vcvt.s32.f32 %v576
    %v833 = vcvt.s32.f32 %v577
    %v834 = vcvt.s32.f32 %v578
    %v835 = vcvt.s32.f32 %v579
    %v836 = vcvt.s32.f32 %v580
    %v837 = vcvt.s32.f32 %v581
    %v838 = vcvt.s32.f32 %v582
    %v839 = vcvt.s32.f32 %v583
    %v840 = vcvt.s32.f32 %v584
    %v841 = vcvt.s32.f32 %v585
    %v842 = vcvt.s32.f32 %v586
    %v843 = vcvt.s32.f32 %v587
    %v844 = vcvt.s32.f32 %v588
    %v845 = vcvt.s32.f32 %v589
    %v846 = vcvt.s32.f32 %v590
    %v847 = vcvt.s32.f32 %v591
    %v848 = vcvt.s32.f32 %v592
    %v849 = vcvt.s32.f32 %v593
    %v850 = vcvt.s32.f32 %v594
    %v851 = vcvt.s32.f32 %v595
    %v852 = vcvt.s32.f32 %v596
    %v853 = vcvt.s32.f32 %v597
    %v854 = vcvt.s32.f32 %v598
    %v855 = vcvt.s32.f32 %v599
    %v856 = vcvt.s32.f32 %v600
    %v857 = vcvt.s32.f32 %v601
    %v858 = vcvt.s32.f32 %v602
    %v859 = vcvt.s32.f32 %v603
    %v860 = vcvt.s32.f32 %v604
    %v861 = vcvt.s32.f32 %v605
    %v862 = vcvt.s32.f32 %v606
    %v863 = vcvt.s32.f32 %v607
    %v864 = vcvt.s32.f32 %v608
    %v865 = vcvt.s32.f32 %v609
    %v866 = vcvt.s32.f32 %v610
    %v867 = vcvt.s32.f32 %v611
    %v868 = vcvt.s32.f32 %v612
    %v869 = vcvt.s32.f32 %v613
    %v870 = vcvt.s32.f32 %v614
    %v871 = vcvt.s32.f32 %v615
    %v872 = vcvt.s32.f32 %v616
    %v873 = vcvt.s32.f32 %v617
    %v874 = vcvt.s32.f32 %v618
    %v875 = vcvt.s32.f32 %v619
    %v876 = vcvt.s32.f32 %v620
    %v877 = vcvt.s32.f32 %v621
    %v878 = vcvt.s32.f32 %v622
    %v879 = vcvt.s32.f32 %v623
    %v880 = vcvt.s32.f32 %v624
    %v881 = vcvt.s32.f32 %v625
    %v882 = vcvt.s32.f32 %v626
    %v883 = vcvt.s32.f32 %v627
    %v884 = vcvt.s32.f32 %v628
    %v885 = vcvt.s32.f32 %v629
    %v886 = vcvt.s32.f32 %v630
    %v887 = vcvt.s32.f32 %v631
    %v888 = vcvt.s32.f32 %v632
    %v889 = vcvt.s32.f32 %v633
    %v890 = vcvt.s32.f32 %v634
    %v891 = vcvt.s32.f32 %v635
    %v892 = vcvt.s32.f32 %v636
    %v893 = vcvt.s32.f32 %v637
    %v894 = vcvt.s32.f32 %v638
    %v895 = vcvt.s32.f32 %v639
    %v896 = vcvt.s32.f32 %v640
    %v897 = vcvt.s32.f32 %v641
    %v898 = vcvt.s32.f32 %v642
    %v899 = vcvt.s32.f32 %v643
    %v900 = vcvt.s32.f32 %v644
    %v901 = vcvt.s32.f32 %v645
    %v902 = vcvt.s32.f32 %v646
    %v903 = vcvt.s32.f32 %v647
    %v904 = vcvt.s32.f32 %v648
    %v905 = vcvt.s32.f32 %v649
    %v906 = vcvt.s32.f32 %v650
    %v907 = vcvt.s32.f32 %v651
    %v908 = vcvt.s32.f32 %v652
    %v909 = vcvt.s32.f32 %v653
    %v910 = vcvt.s32.f32 %v654
    %v911 = vcvt.s32.f32 %v655
    %v912 = vcvt.s32.f32 %v656
    %v913 = vcvt.s32.f32 %v657
    %v914 = vcvt.s32.f32 %v658
    %v915 = vcvt.s32.f32 %v659
    %v916 = vcvt.s32.f32 %v660
    %v917 = vcvt.s32.f32 %v661
    %v918 = vcvt.s32.f32 %v662
    %v919 = vcvt.s32.f32 %v663
    %v920 = vcvt.s32.f32 %v664
    %v921 = vcvt.s32.f32 %v665
    %v922 = vcvt.s32.f32 %v666
    %v923 = vcvt.s32.f32 %v667
    %v924 = vcvt.s32.f32 %v668
    %v925 = vcvt.s32.f32 %v669
    %v926 = vcvt.s32.f32 %v670
    %v927 = vcvt.s32.f32 %v671
    %v928 = vcvt.s32.f32 %v672
    %929 = vmatprep.subr.mxu0 %v734
    %930 = vmatpush1.msra.mxu0 %v733
    %931 = vmatprep.subr.mxu0 %v730
    %932 = vmatpush1.msra.mxu0 %v729
    %933 = vmatprep.subr.mxu0 %v726
    %934 = vmatpush1.msra.mxu0 %v725
    %935 = vmatprep.subr.mxu0 %v722
    %936 = vmatpush1.msra.mxu0 %v721
    %937 = vmatprep.subr.mxu0 %v718
    %938 = vmatpush1.msra.mxu0 %v717
    %939 = vmatprep.subr.mxu0 %v714
    %940 = vmatpush1.msra.mxu0 %v713
    %941 = vmatprep.subr.mxu0 %v710
    %942 = vmatpush1.msra.mxu0 %v709
    %943 = vmatprep.subr.mxu0 %v706
    %944 = vmatpush1.msra.mxu0 %v705
    %945 = vmatprep.subr.mxu0 %v702
    %946 = vmatpush1.msra.mxu0 %v701
    %947 = vmatprep.subr.mxu0 %v698
    %948 = vmatpush1.msra.mxu0 %v697
    %949 = vmatprep.subr.mxu0 %v694
    %950 = vmatpush1.msra.mxu0 %v693
    %951 = vmatprep.subr.mxu0 %v690
    %952 = vmatpush1.msra.mxu0 %v689
    %953 = vmatprep.subr.mxu0 %v686
    %954 = vmatpush1.msra.mxu0 %v685
    %955 = vmatprep.subr.mxu0 %v682
    %956 = vmatpush1.msra.mxu0 %v681
    %957 = vmatprep.subr.mxu0 %v678
    %958 = vmatpush1.msra.mxu0 %v677
    %959 = vmatprep.subr.mxu0 %v674
    %960 = vmatpush1.msra.mxu0 %v673
    %961 = vmatprep.subr.mxu0 %v798
    %962 = vmatpush2.msra.mxu0 %v797
    %963 = vmatprep.subr.mxu0 %v794
    %964 = vmatpush2.msra.mxu0 %v793
    %965 = vmatprep.subr.mxu0 %v790
    %966 = vmatpush2.msra.mxu0 %v789
    %967 = vmatprep.subr.mxu0 %v786
    %968 = vmatpush2.msra.mxu0 %v785
    %969 = vmatprep.subr.mxu0 %v782
    %970 = vmatpush2.msra.mxu0 %v781
    %971 = vmatprep.subr.mxu0 %v778
    %972 = vmatpush2.msra.mxu0 %v777
    %973 = vmatprep.subr.mxu0 %v774
    %974 = vmatpush2.msra.mxu0 %v773
    %975 = vmatprep.subr.mxu0 %v770
    %976 = vmatpush2.msra.mxu0 %v769
    %977 = vmatprep.subr.mxu0 %v766
    %978 = vmatpush2.msra.mxu0 %v765
    %979 = vmatprep.subr.mxu0 %v762
    %980 = vmatpush2.msra.mxu0 %v761
    %981 = vmatprep.subr.mxu0 %v758
    %982 = vmatpush2.msra.mxu0 %v757
    %983 = vmatprep.subr.mxu0 %v754
    %984 = vmatpush2.msra.mxu0 %v753
    %985 = vmatprep.subr.mxu0 %v750
    %986 = vmatpush2.msra.mxu0 %v749
    %987 = vmatprep.subr.mxu0 %v746
    %988 = vmatpush2.msra.mxu0 %v745
    %989 = vmatprep.subr.mxu0 %v742
    %990 = vmatpush2.msra.mxu0 %v741
    %991 = vmatprep.subr.mxu0 %v738
    %992 = vmatpush2.msra.mxu0 %v737
    %993 = vmatprep.mubr.f32.mxu0 %v73
    %994 = vmatmul.mubr.f32.gmra.mxu0 %v69
    %v995 = vpop.f32.mrf.mxu0
    %v996 = vadd.f32 0.0, %v995
    %v997 = vpop.f32.mrf.mxu0
    %v998 = vadd.f32 0.0, %v997
    %999 = vdwg.mxu0
    %1000 = vmatprep.subr.mxu0 %v862
    %1001 = vmatpush1.msra.mxu0 %v861
    %1002 = vmatprep.subr.mxu0 %v858
    %1003 = vmatpush1.msra.mxu0 %v857
    %1004 = vmatprep.subr.mxu0 %v854
    %1005 = vmatpush1.msra.mxu0 %v853
    %1006 = vmatprep.subr.mxu0 %v850
    %1007 = vmatpush1.msra.mxu0 %v849
    %1008 = vmatprep.subr.mxu0 %v846
    %1009 = vmatpush1.msra.mxu0 %v845
    %1010 = vmatprep.subr.mxu0 %v842
    %1011 = vmatpush1.msra.mxu0 %v841
    %1012 = vmatprep.subr.mxu0 %v838
    %1013 = vmatpush1.msra.mxu0 %v837
    %1014 = vmatprep.subr.mxu0 %v834
    %1015 = vmatpush1.msra.mxu0 %v833
    %1016 = vmatprep.subr.mxu0 %v830
    %1017 = vmatpush1.msra.mxu0 %v829
    %1018 = vmatprep.subr.mxu0 %v826
    %1019 = vmatpush1.msra.mxu0 %v825
    %1020 = vmatprep.subr.mxu0 %v822
    %1021 = vmatpush1.msra.mxu0 %v821
    %1022 = vmatprep.subr.mxu0 %v818
    %1023 = vmatpush1.msra.mxu0 %v817
    %1024 = vmatprep.subr.mxu0 %v814
    %1025 = vmatpush1.msra.mxu0 %v813
    %1026 = vmatprep.subr.mxu0 %v810
    %1027 = vmatpush1.msra.mxu0 %v809
    %1028 = vmatprep.subr.mxu0 %v806
    %1029 = vmatpush1.msra.mxu0 %v805
    %1030 = vmatprep.subr.mxu0 %v802
    %1031 = vmatpush1.msra.mxu0 %v801
    %1032 = vmatprep.subr.mxu0 %v926
    %1033 = vmatpush2.msra.mxu0 %v925
    %1034 = vmatprep.subr.mxu0 %v922
    %1035 = vmatpush2.msra.mxu0 %v921
    %1036 = vmatprep.subr.mxu0 %v918
    %1037 = vmatpush2.msra.mxu0 %v917
    %1038 = vmatprep.subr.mxu0 %v914
    %1039 = vmatpush2.msra.mxu0 %v913
    %1040 = vmatprep.subr.mxu0 %v910
    %1041 = vmatpush2.msra.mxu0 %v909
    %1042 = vmatprep.subr.mxu0 %v906
    %1043 = vmatpush2.msra.mxu0 %v905
    %1044 = vmatprep.subr.mxu0 %v902
    %1045 = vmatpush2.msra.mxu0 %v901
    %1046 = vmatprep.subr.mxu0 %v898
    %1047 = vmatpush2.msra.mxu0 %v897
    %1048 = vmatprep.subr.mxu0 %v894
    %1049 = vmatpush2.msra.mxu0 %v893
    %1050 = vmatprep.subr.mxu0 %v890
    %1051 = vmatpush2.msra.mxu0 %v889
    %1052 = vmatprep.subr.mxu0 %v886
    %1053 = vmatpush2.msra.mxu0 %v885
    %1054 = vmatprep.subr.mxu0 %v882
    %1055 = vmatpush2.msra.mxu0 %v881
    %1056 = vmatprep.subr.mxu0 %v878
    %1057 = vmatpush2.msra.mxu0 %v877
    %1058 = vmatprep.subr.mxu0 %v874
    %1059 = vmatpush2.msra.mxu0 %v873
    %1060 = vmatprep.subr.mxu0 %v870
    %1061 = vmatpush2.msra.mxu0 %v869
    %1062 = vmatprep.subr.mxu0 %v866
    %1063 = vmatpush2.msra.mxu0 %v865
    %1064 = vmatprep.mubr.f32.mxu0 %v81
    %1065 = vmatmul.mubr.f32.gmra.mxu0 %v77
    %v1066 = vpop.f32.mrf.mxu0
    %v1067 = vadd.f32 %v996, %v1066
    %v1068 = vpop.f32.mrf.mxu0
    %v1069 = vadd.f32 %v998, %v1068
    %1070 = vdwg.mxu0
    %1071 = vmatprep.subr.mxu0 %v736
    %1072 = vmatpush1.msra.mxu0 %v735
    %1073 = vmatprep.subr.mxu0 %v732
    %1074 = vmatpush1.msra.mxu0 %v731
    %1075 = vmatprep.subr.mxu0 %v728
    %1076 = vmatpush1.msra.mxu0 %v727
    %1077 = vmatprep.subr.mxu0 %v724
    %1078 = vmatpush1.msra.mxu0 %v723
    %1079 = vmatprep.subr.mxu0 %v720
    %1080 = vmatpush1.msra.mxu0 %v719
    %1081 = vmatprep.subr.mxu0 %v716
    %1082 = vmatpush1.msra.mxu0 %v715
    %1083 = vmatprep.subr.mxu0 %v712
    %1084 = vmatpush1.msra.mxu0 %v711
    %1085 = vmatprep.subr.mxu0 %v708
    %1086 = vmatpush1.msra.mxu0 %v707
    %1087 = vmatprep.subr.mxu0 %v704
    %1088 = vmatpush1.msra.mxu0 %v703
    %1089 = vmatprep.subr.mxu0 %v700
    %1090 = vmatpush1.msra.mxu0 %v699
    %1091 = vmatprep.subr.mxu0 %v696
    %1092 = vmatpush1.msra.mxu0 %v695
    %1093 = vmatprep.subr.mxu0 %v692
    %1094 = vmatpush1.msra.mxu0 %v691
    %1095 = vmatprep.subr.mxu0 %v688
    %1096 = vmatpush1.msra.mxu0 %v687
    %1097 = vmatprep.subr.mxu0 %v684
    %1098 = vmatpush1.msra.mxu0 %v683
    %1099 = vmatprep.subr.mxu0 %v680
    %1100 = vmatpush1.msra.mxu0 %v679
    %1101 = vmatprep.subr.mxu0 %v676
    %1102 = vmatpush1.msra.mxu0 %v675
    %1103 = vmatprep.subr.mxu0 %v800
    %1104 = vmatpush2.msra.mxu0 %v799
    %1105 = vmatprep.subr.mxu0 %v796
    %1106 = vmatpush2.msra.mxu0 %v795
    %1107 = vmatprep.subr.mxu0 %v792
    %1108 = vmatpush2.msra.mxu0 %v791
    %1109 = vmatprep.subr.mxu0 %v788
    %1110 = vmatpush2.msra.mxu0 %v787
    %1111 = vmatprep.subr.mxu0 %v784
    %1112 = vmatpush2.msra.mxu0 %v783
    %1113 = vmatprep.subr.mxu0 %v780
    %1114 = vmatpush2.msra.mxu0 %v779
    %1115 = vmatprep.subr.mxu0 %v776
    %1116 = vmatpush2.msra.mxu0 %v775
    %1117 = vmatprep.subr.mxu0 %v772
    %1118 = vmatpush2.msra.mxu0 %v771
    %1119 = vmatprep.subr.mxu0 %v768
    %1120 = vmatpush2.msra.mxu0 %v767
    %1121 = vmatprep.subr.mxu0 %v764
    %1122 = vmatpush2.msra.mxu0 %v763
    %1123 = vmatprep.subr.mxu0 %v760
    %1124 = vmatpush2.msra.mxu0 %v759
    %1125 = vmatprep.subr.mxu0 %v756
    %1126 = vmatpush2.msra.mxu0 %v755
    %1127 = vmatprep.subr.mxu0 %v752
    %1128 = vmatpush2.msra.mxu0 %v751
    %1129 = vmatprep.subr.mxu0 %v748
    %1130 = vmatpush2.msra.mxu0 %v747
    %1131 = vmatprep.subr.mxu0 %v744
    %1132 = vmatpush2.msra.mxu0 %v743
    %1133 = vmatprep.subr.mxu0 %v740
    %1134 = vmatpush2.msra.mxu0 %v739
    %1135 = vmatprep.mubr.f32.mxu0 %v73
    %1136 = vmatmul.mubr.f32.gmra.mxu0 %v69
    %v1137 = vpop.f32.mrf.mxu0
    %v1138 = vadd.f32 0.0, %v1137
    %v1139 = vpop.f32.mrf.mxu0
    %v1140 = vadd.f32 0.0, %v1139
    %1141 = vdwg.mxu0
    %1142 = vmatprep.subr.mxu0 %v864
    %1143 = vmatpush1.msra.mxu0 %v863
    %1144 = vmatprep.subr.mxu0 %v860
    %1145 = vmatpush1.msra.mxu0 %v859
    %1146 = vmatprep.subr.mxu0 %v856
    %1147 = vmatpush1.msra.mxu0 %v855
    %1148 = vmatprep.subr.mxu0 %v852
    %1149 = vmatpush1.msra.mxu0 %v851
    %1150 = vmatprep.subr.mxu0 %v848
    %1151 = vmatpush1.msra.mxu0 %v847
    %1152 = vmatprep.subr.mxu0 %v844
    %1153 = vmatpush1.msra.mxu0 %v843
    %1154 = vmatprep.subr.mxu0 %v840
    %1155 = vmatpush1.msra.mxu0 %v839
    %1156 = vmatprep.subr.mxu0 %v836
    %1157 = vmatpush1.msra.mxu0 %v835
    %1158 = vmatprep.subr.mxu0 %v832
    %1159 = vmatpush1.msra.mxu0 %v831
    %1160 = vmatprep.subr.mxu0 %v828
    %1161 = vmatpush1.msra.mxu0 %v827
    %1162 = vmatprep.subr.mxu0 %v824
    %1163 = vmatpush1.msra.mxu0 %v823
    %1164 = vmatprep.subr.mxu0 %v820
    %1165 = vmatpush1.msra.mxu0 %v819
    %1166 = vmatprep.subr.mxu0 %v816
    %1167 = vmatpush1.msra.mxu0 %v815
    %1168 = vmatprep.subr.mxu0 %v812
    %1169 = vmatpush1.msra.mxu0 %v811
    %1170 = vmatprep.subr.mxu0 %v808
    %1171 = vmatpush1.msra.mxu0 %v807
    %1172 = vmatprep.subr.mxu0 %v804
    %1173 = vmatpush1.msra.mxu0 %v803
    %1174 = vmatprep.subr.mxu0 %v928
    %1175 = vmatpush2.msra.mxu0 %v927
    %1176 = vmatprep.subr.mxu0 %v924
    %1177 = vmatpush2.msra.mxu0 %v923
    %1178 = vmatprep.subr.mxu0 %v920
    %1179 = vmatpush2.msra.mxu0 %v919
    %1180 = vmatprep.subr.mxu0 %v916
    %1181 = vmatpush2.msra.mxu0 %v915
    %1182 = vmatprep.subr.mxu0 %v912
    %1183 = vmatpush2.msra.mxu0 %v911
    %1184 = vmatprep.subr.mxu0 %v908
    %1185 = vmatpush2.msra.mxu0 %v907
    %1186 = vmatprep.subr.mxu0 %v904
    %1187 = vmatpush2.msra.mxu0 %v903
    %1188 = vmatprep.subr.mxu0 %v900
    %1189 = vmatpush2.msra.mxu0 %v899
    %1190 = vmatprep.subr.mxu0 %v896
    %1191 = vmatpush2.msra.mxu0 %v895
    %1192 = vmatprep.subr.mxu0 %v892
    %1193 = vmatpush2.msra.mxu0 %v891
    %1194 = vmatprep.subr.mxu0 %v888
    %1195 = vmatpush2.msra.mxu0 %v887
    %1196 = vmatprep.subr.mxu0 %v884
    %1197 = vmatpush2.msra.mxu0 %v883
    %1198 = vmatprep.subr.mxu0 %v880
    %1199 = vmatpush2.msra.mxu0 %v879
    %1200 = vmatprep.subr.mxu0 %v876
    %1201 = vmatpush2.msra.mxu0 %v875
    %1202 = vmatprep.subr.mxu0 %v872
    %1203 = vmatpush2.msra.mxu0 %v871
    %1204 = vmatprep.subr.mxu0 %v868
    %1205 = vmatpush2.msra.mxu0 %v867
    %1206 = vmatprep.mubr.f32.mxu0 %v81
    %1207 = vmatmul.mubr.f32.gmra.mxu0 %v77
    %v1208 = vpop.f32.mrf.mxu0
    %v1209 = vadd.f32 %v1138, %v1208
    %v1210 = vpop.f32.mrf.mxu0
    %v1211 = vadd.f32 %v1140, %v1210
    %1212 = vdwg.mxu0
    %v1213 = vsub.f32 %v95, %v1067
    %v1214 = vsub.f32 %v95, %v1069
    %v1215 = vsub.f32 %v95, %v1209
    %v1216 = vsub.f32 %v95, %v1211
    %v1217 = vadd.f32 %v19, 1.0
    %v1218 = vadd.f32 %v20, 1.0
    %v1219 = vadd.f32 %v21, 1.0
    %v1220 = vadd.f32 %v22, 1.0
    %v1221 = vadd.f32 %v95, %v1217
    %v1222 = vadd.f32 %v95, %v1218
    %v1223 = vadd.f32 %v95, %v1219
    %v1224 = vadd.f32 %v95, %v1220
    %v1225 = vsub.f32 %v1221, %v1067
    %v1226 = vsub.f32 %v1222, %v1069
    %v1227 = vsub.f32 %v1223, %v1209
    %v1228 = vsub.f32 %v1224, %v1211
    %v1229 = vrcp.pop %v1225
    %v1230 = vmul.f32 %v1213, %v1229
    %v1231 = vrcp.pop %v1226
    %v1232 = vmul.f32 %v1214, %v1231
    %v1233 = vrcp.pop %v1227
    %v1234 = vmul.f32 %v1215, %v1233
    %v1235 = vrcp.pop %v1228
    %v1236 = vmul.f32 %v1216, %v1235
    %v1237 = vsub.f32 1.0, %v1230
    %v1238 = vsub.f32 1.0, %v1232
    %v1239 = vsub.f32 1.0, %v1234
    %v1240 = vsub.f32 1.0, %v1236
    %v1241 = vsub.f32 %v1067, %v69
    %v1242 = vsub.f32 %v1069, %v73
    %v1243 = vsub.f32 %v1209, %v77
    %v1244 = vsub.f32 %v1211, %v81
    %v1245 = vsub.f32 %v95, %v1241
    %v1246 = vsub.f32 %v95, %v1242
    %v1247 = vsub.f32 %v95, %v1243
    %v1248 = vsub.f32 %v95, %v1244
    %v1249 = vadd.f32 %v95, %v19
    %v1250 = vadd.f32 %v95, %v20
    %v1251 = vadd.f32 %v95, %v21
    %v1252 = vadd.f32 %v95, %v22
    %v1253 = vsub.f32 %v1249, %v1241
    %v1254 = vsub.f32 %v1250, %v1242
    %v1255 = vsub.f32 %v1251, %v1243
    %v1256 = vsub.f32 %v1252, %v1244
    %v1257 = vrcp.pop %v1253
    %v1258 = vmul.f32 %v1245, %v1257
    %v1259 = vrcp.pop %v1254
    %v1260 = vmul.f32 %v1246, %v1259
    %v1261 = vrcp.pop %v1255
    %v1262 = vmul.f32 %v1247, %v1261
    %v1263 = vrcp.pop %v1256
    %v1264 = vmul.f32 %v1248, %v1263
    %v1265 = vsub.f32 1.0, %v1258
    %v1266 = vsub.f32 1.0, %v1260
    %v1267 = vsub.f32 1.0, %v1262
    %v1268 = vsub.f32 1.0, %v1264
    %vm1269 = vcmp.eq.s32.totalorder %v15, 0
    %vm1270 = vcmp.eq.s32.totalorder %v16, 0
    %vm1271 = vcmp.eq.s32.totalorder %v17, 0
    %vm1272 = vcmp.eq.s32.totalorder %v18, 0
    %v1273 = vsel %vm1269, 0.0, %v1265
    %v1274 = vsel %vm1270, 0.0, %v1266
    %v1275 = vsel %vm1271, 0.0, %v1267
    %v1276 = vsel %vm1272, 0.0, %v1268
    %v1277 = vsub.f32 %v1237, %v1273
    %v1278 = vsub.f32 %v1238, %v1274
    %v1279 = vsub.f32 %v1239, %v1275
    %v1280 = vsub.f32 %v1240, %v1276
    %vm1281 = vcmp.gt.f32.partialorder %v12, 0.0
    %v1282 = vadd.f32 %v12, 1.0
    %v1283 = vmul.f32 %v12, 1.442695
    %v1284 = vpow.pop %v1283
    %v1285 = vsel %vm1281, %v1282, %v1284
    %v1290 = vcombine.low %v1277, %v1278
    %v1291 = vcombine.low %v1279, %v1280
    %v1293 = vunpack.c.l.s4 1966171168
    %v1294 = vunpack.c.0.s8 %v1293
    %v1295 = vlaneseq
    %v1296 = vshrl.u32 %v1295, 7
    %v1297 = vsub.s32 %v1294, %v1296
    %v1298 = vrot.slane %v1290, %v1297
    %v1300 = vunpack.c.l.s4 1966171168
    %v1301 = vunpack.c.0.s8 %v1300
    %v1302 = vlaneseq
    %v1303 = vshrl.u32 %v1302, 7
    %v1304 = vsub.s32 %v1301, %v1303
    %v1305 = vrot.slane %v1291, %v1304
    %v1306 = vcombine.low %v1298, %v1305
    %v1308 = vunpack.c.l.s4 1966171168
    %v1309 = vunpack.c.0.s8 %v1308
    %v1310 = vlaneseq
    %v1311 = vshrl.u32 %v1310, 7
    %v1312 = vsub.s32 %v1309, %v1311
    %v1313 = vrot.slane %v1306, %v1312
    %v1315 = vmul.f32 %v1285, %v1313
    %v1316 = vmul.f32 %v1315, %v62
    %v1318 = vlaneseq
    %v1319 = vshrl.u32 %v1318, 7
    %v1320 = vsub.s32 0, %v1319
    %v1321 = vrot.slane %v1316, %v1320
    %v1322 = vlaneseq
    %v1323 = vshrl.u32 %v1322, 7
    %v1324 = vsub.s32 1, %v1323
    %v1325 = vrot.slane %v1316, %v1324
    %v1326 = vlaneseq
    %v1327 = vshrl.u32 %v1326, 7
    %v1328 = vsub.s32 2, %v1327
    %v1329 = vrot.slane %v1316, %v1328
    %v1330 = vlaneseq
    %v1331 = vshrl.u32 %v1330, 7
    %v1332 = vsub.s32 3, %v1331
    %v1333 = vrot.slane %v1316, %v1332
    %v1338 = vsel %vm86, %v1321, 0.0
    %v1339 = vsel %vm86, %v1325, 0.0
    %v1340 = vadd.f32 %v1338, %v1339
    %v1341 = vsel %vm86, %v1329, 0.0
    %v1342 = vadd.f32 %v1340, %v1341
    %v1343 = vsel %vm86, %v1333, 0.0
    %v1344 = vadd.f32 %v1342, %v1343
    %1345 = vadd.xlane.f32.xlu0 %v1344
    %v1346 = vpop.xlane.xlu0 %1345
    %vm1347 = vcmask 0
    %1348 = vst.msk [vmem:[#allocation2] sm:$0x1] %vm1347, %v1346
    // Predicated region
    $region10: #{lovasz_loss.3} parent=1 // pred_check
      _
    $region11: #{lovasz_loss.3} parent=1 // pred_check_branch
      %1350 = sbr.rel (0) target = $region13
    $region12: #{lovasz_loss.3} parent=1 // pred_region
      %s1352 = ssub.s32 16, 16
      %1353 = vsyncadd [#allocation3], %s1352
      %s1355 = sshll.u32 [#allocation2], 4
      %s1356 = int_to_ptr.vmem [resolvable:$true] %s1355
      %1358 = dma.vmem_to_hbm [thread:$0]  %s1356, 16, %s2, [#allocation3]
    $region13: #{lovasz_loss.3} parent=1 // pred_fallthru
      _
    // Predicated region
    $region14: #{lovasz_loss.3} parent=1 // pred_check
      _
    $region15: #{lovasz_loss.3} parent=1 // pred_check_branch
      %1360 = sbr.rel (0) target = $region17
    $region16: #{lovasz_loss.3} parent=1 // pred_region
      %1361 = dma.done [#allocation3], 16
    $region17: #{lovasz_loss.3} parent=1 // pred_fallthru
      _
    %1362 = vsyncpa [#allocation3], 1

</llo_original>
